<compile_context>
chip_gen: v6e
topology: v6e:2x2x1
jax: 0.10.0
libtpu: 0.0.40
codegen_flags: <defaults>
</compile_context>

<pallas_src>
import jax
import jax.numpy as jnp
import numpy as np
from jax.experimental import pallas as pl
from jax.experimental.pallas import tpu as pltpu

HIDDEN = 128
SEG_PAD = 128                           # lane-dense output width
STATE_C, STATE_L = 9, 2                 # implied by Flatten -> Linear(8, 6)
HPOLY_C, HPOLY_H, HPOLY_W = 50, 4, 4    # implied by Flatten -> Linear(16, 32)
K = 3


# -------------------------- shared math helpers -------------------------------
def _layernorm(x, gamma, beta, eps=1e-5):
    # Single-pass variance: E[x^2] - E[x]^2 (clamped against rounding).
    mean = jnp.mean(x, axis=-1, keepdims=True)
    var = jnp.maximum(jnp.mean(x * x, axis=-1, keepdims=True) - mean * mean, 0.0)
    return (x - mean) * jax.lax.rsqrt(var + eps) * gamma + beta


def _softplus_beta2(x):
    # nn.Softplus(beta=2, threshold=20): linear when 2*x > 20.  Stable form.
    sp = jnp.maximum(x, 0.0) + 0.5 * jnp.log1p(jnp.exp(-jnp.abs(2.0 * x)))
    return jnp.where(2.0 * x > 20.0, x, sp)


# --------------------- conv -> dense-matmul weight expansion -------------------
def expand_state_conv_weight(c1w):
    """Conv1d(9->8,k3,p1) on L=2 as a dense (18, 16) matmul weight.
    Input rows follow x.reshape(B, 9*2) (row = c*2 + l); output columns are
    position-major (col = p*8 + o)."""
    w = c1w.reshape(STATE_C, K, 8)                       # [c, k, o]
    big = jnp.zeros((STATE_C * STATE_L, STATE_L * 8), jnp.float32)
    for p in range(STATE_L):
        for k in range(K):
            l = p - 1 + k
            if 0 <= l < STATE_L:
                big = big.at[l::STATE_L, p * 8:(p + 1) * 8].set(w[:, k, :])
    return big


def expand_hpoly_conv_weight(c2w):
    """Conv2d(50->16,k3,p1) on 4x4 as a dense (800, 256) matmul weight.
    Input rows follow x.reshape(B, 50*16) (row = c*16 + y*4 + x); output columns
    are position-major (col = (i*4+j)*16 + o)."""
    w = c2w.reshape(HPOLY_C, K, K, 16)                   # [c, ki, kj, o]
    npos = HPOLY_H * HPOLY_W
    big = jnp.zeros((HPOLY_C * npos, npos * 16), jnp.float32)
    for i in range(HPOLY_H):
        for j in range(HPOLY_W):
            col0 = (i * HPOLY_W + j) * 16
            for ki in range(K):
                for kj in range(K):
                    y, x = i - 1 + ki, j - 1 + kj
                    if 0 <= y < HPOLY_H and 0 <= x < HPOLY_W:
                        big = big.at[(y * HPOLY_W + x)::npos,
                                     col0:col0 + 16].set(w[:, ki, kj, :])
    return big


# ------------------------------ Pallas kernel ----------------------------------
def fused_forward_kernel(sp_ref, hp_ref, c1w_ref, c2w_ref, w1_ref, w2_ref,
                         w3_ref, const_ref, out_ref):
    f32, bf16 = jnp.float32, jnp.bfloat16
    cst = const_ref[...]                                 # (16, 256) packed constants

    # ---- state branch: Conv1d(9->8) as one (18 -> 2*8) matmul -----------------
    s = jnp.dot(sp_ref[...].astype(bf16), c1w_ref[...], preferred_element_type=f32)
    s = jnp.maximum(s + cst[0:1, 0:16], 0.0)             # +bias, ReLU   (TB, 16)
    s_pool = jnp.maximum(s[:, 0:8], s[:, 8:16])          # MaxPool1d(2)  (TB, 8)

    # ---- hpoly branch: Conv2d(50->16) as one (800 -> 16*16) matmul ------------
    h = jnp.dot(hp_ref[...].astype(bf16), c2w_ref[...], preferred_element_type=f32)
    h = jnp.maximum(h + cst[1:2, 0:256], 0.0)            # +bias, ReLU   (TB, 256)
    # 2x MaxPool2d(2) on 4x4 == global max over the 16 positions; positions are
    # lane groups of 16, so reduce with a 4-step lane-halving tree.
    m = jnp.maximum(h[:, 0:128], h[:, 128:256])
    m = jnp.maximum(m[:, 0:64], m[:, 64:128])
    m = jnp.maximum(m[:, 0:32], m[:, 32:64])
    m = jnp.maximum(m[:, 0:16], m[:, 16:32])             # (TB, 16)

    # ---- first MLP layer: branch Linears are pre-folded into w1_ref -----------
    # feat lanes: [0:8]=pooled state conv, [8:24]=pooled hpoly conv, [24:32]=0
    feat = jnp.concatenate([s_pool, m, jnp.zeros_like(s_pool)], axis=-1)   # (TB, 32)
    h1 = (jnp.dot(feat.astype(bf16), w1_ref[...], preferred_element_type=f32)
          + cst[2:3, 0:HIDDEN])
    h1 = jnp.maximum(_layernorm(h1, cst[3:4, 0:HIDDEN], cst[4:5, 0:HIDDEN]), 0.0)
    # TODO(synk): nn.Dropout(p=0.2) treated as identity (inference semantics).
    h2 = (jnp.dot(h1.astype(bf16), w2_ref[...], preferred_element_type=f32)
          + cst[5:6, 0:HIDDEN])
    h2 = jnp.maximum(_layernorm(h2, cst[6:7, 0:HIDDEN], cst[7:8, 0:HIDDEN]), 0.0)
    o = (jnp.dot(h2.astype(bf16), w3_ref[...], preferred_element_type=f32)
         + cst[8:9, 0:SEG_PAD])
    out_ref[...] = _softplus_beta2(o)


# ------------------------------ JAX glue ---------------------------------------
def _round_up(x, m):
    return (x + m - 1) // m * m


def init_params(seg, hidden=HIDDEN, seed=0):
    """Deterministic synthetic parameters (reference layout, feature dim last)."""
    ks = jax.random.split(jax.random.PRNGKey(seed), 16)

    def u(k, shape, bound):
        return jax.random.uniform(k, shape, jnp.float32, -bound, bound)

    p = {}
    b = 1.0 / np.sqrt(STATE_C * K)
    p["c1w"] = u(ks[0], (STATE_C * K, 8), b)             # Conv1d weight as (27, 8)
    p["c1b"] = u(ks[1], (1, 8), b)
    b = 1.0 / np.sqrt(8)
    p["lsw"] = u(ks[2], (8, 6), b)                       # Linear(8, 6)
    p["lsb"] = u(ks[3], (1, 6), b)
    b = 1.0 / np.sqrt(HPOLY_C * K * K)
    p["c2w"] = u(ks[4], (HPOLY_C * K * K, 16), b)        # Conv2d weight as (450, 16)
    p["c2b"] = u(ks[5], (1, 16), b)
    b = 1.0 / np.sqrt(16)
    p["lhw"] = u(ks[6], (16, 32), b)                     # Linear(16, 32)
    p["lhb"] = u(ks[7], (1, 32), b)
    # output_module linears: kaiming_normal_ (fan_in), default-uniform biases
    w1 = jax.random.normal(ks[8], (38, hidden), jnp.float32) * np.sqrt(2.0 / 38)
    p["w1s"], p["w1h"] = w1[:6], w1[6:]
    p["b1"] = u(ks[9], (1, hidden), 1.0 / np.sqrt(38))
    p["g1"] = jnp.ones((1, hidden), jnp.float32)
    p["be1"] = jnp.zeros((1, hidden), jnp.float32)
    p["w2"] = jax.random.normal(ks[10], (hidden, hidden), jnp.float32) * np.sqrt(2.0 / hidden)
    p["b2"] = u(ks[11], (1, hidden), 1.0 / np.sqrt(hidden))
    p["g2"] = jnp.ones((1, hidden), jnp.float32)
    p["be2"] = jnp.zeros((1, hidden), jnp.float32)
    p["w3"] = jax.random.normal(ks[12], (hidden, seg), jnp.float32) * np.sqrt(2.0 / hidden)
    p["b3"] = u(ks[13], (1, seg), 1.0 / np.sqrt(hidden))
    return p


def prepare_kernel_params(params, seg):
    """One-time conversion of reference-layout params into the fused-kernel layout.
    All fusions are done in f32, then cast to bf16 once."""
    f32, bf16 = jnp.float32, jnp.bfloat16
    npos = HPOLY_H * HPOLY_W
    kp = {
        "c1w_big": expand_state_conv_weight(params["c1w"]).astype(bf16),   # (18, 16)
        "c2w_big": expand_hpoly_conv_weight(params["c2w"]).astype(bf16),   # (800, 256)
        "w2": params["w2"].astype(bf16),                                   # (128, 128)
    }
    # Exact fold: Linear(8,6) @ W1[:6]  and  Linear(16,32) @ W1[6:]  (no nonlinearity
    # in between), biases folded into b1.
    w_state = params["lsw"] @ params["w1s"]                                # (8, 128)
    w_hpoly = params["lhw"] @ params["w1h"]                                # (16, 128)
    w1_fused = jnp.zeros((32, HIDDEN), f32)
    w1_fused = w1_fused.at[0:8, :].set(w_state).at[8:24, :].set(w_hpoly)
    kp["w1"] = w1_fused.astype(bf16)                                       # (32, 128)
    b1_fused = (params["b1"] + params["lsb"] @ params["w1s"]
                + params["lhb"] @ params["w1h"])                           # (1, 128)
    w3p = jnp.zeros((HIDDEN, SEG_PAD), f32).at[:, :seg].set(params["w3"])
    kp["w3"] = w3p.astype(bf16)                                            # (128, 128)
    # Pack all per-feature constants into one f32 block (single DMA per buffer).
    c = jnp.zeros((16, 256), f32)
    c = c.at[0, :STATE_L * 8].set(jnp.tile(params["c1b"], (1, STATE_L))[0])
    c = c.at[1, :npos * 16].set(jnp.tile(params["c2b"], (1, npos))[0])
    c = c.at[2, :HIDDEN].set(b1_fused[0])
    c = c.at[3, :HIDDEN].set(params["g1"][0])
    c = c.at[4, :HIDDEN].set(params["be1"][0])
    c = c.at[5, :HIDDEN].set(params["b2"][0])
    c = c.at[6, :HIDDEN].set(params["g2"][0])
    c = c.at[7, :HIDDEN].set(params["be2"][0])
    c = c.at[8, :seg].set(params["b3"][0])
    kp["const"] = c
    return kp


def conv_mlp_minsnap_forward(kparams, stacked_state, stacked_hpolys, seg,
                             batch_tile=1024):
    B = stacked_state.shape[0]
    # Reshape only (no dtype round-trip); inputs are streamed f32 and cast to
    # bf16 inside the kernel, avoiding an extra wrapper-side HBM pass over hp.
    sp = stacked_state.astype(jnp.float32).reshape(B, STATE_C * STATE_L)
    hp = stacked_hpolys.astype(jnp.float32).reshape(B, HPOLY_C * HPOLY_H * HPOLY_W)

    # Tile selection: bound padding waste to < 1 tile; force >= 2 grid steps for
    # any non-trivial B so v7x's two TensorCores both get work.
    n_tiles = max(1, pl.cdiv(B, batch_tile))
    if n_tiles == 1 and B > 8:
        n_tiles = 2
    tb = _round_up(pl.cdiv(B, n_tiles), 8)
    b_pad = n_tiles * tb
    if b_pad != B:
        sp = jnp.pad(sp, ((0, b_pad - B), (0, 0)))
        hp = jnp.pad(hp, ((0, b_pad - B), (0, 0)))

    weights = (kparams["c1w_big"], kparams["c2w_big"], kparams["w1"],
               kparams["w2"], kparams["w3"], kparams["const"])

    def weight_spec(a):
        r, c = a.shape
        return pl.BlockSpec((r, c), lambda i: (0, 0))    # constant block -> fetched once

    in_specs = ([pl.BlockSpec((tb, STATE_C * STATE_L), lambda i: (i, 0)),
                 pl.BlockSpec((tb, HPOLY_C * HPOLY_H * HPOLY_W), lambda i: (i, 0))]
                + [weight_spec(a) for a in weights])
    out_specs = pl.BlockSpec((tb, SEG_PAD), lambda i: (i, 0))

    flops = 2 * b_pad * (18 * 16 + 800 * 256 + 32 * HIDDEN
                         + HIDDEN * HIDDEN + HIDDEN * SEG_PAD)
    bytes_accessed = int(sp.size * 4 + hp.size * 4
                         + sum(int(a.size) * a.dtype.itemsize for a in weights)
                         + b_pad * SEG_PAD * 4)
    cost = pl.CostEstimate(flops=flops,
                           transcendentals=2 * b_pad * (SEG_PAD + 2),
                           bytes_accessed=bytes_accessed)

    out = pl.pallas_call(
        fused_forward_kernel,
        out_shape=jax.ShapeDtypeStruct((b_pad, SEG_PAD), jnp.float32),
        grid=(n_tiles,),
        in_specs=in_specs,
        out_specs=out_specs,
        compiler_params=pltpu.CompilerParams(
            dimension_semantics=("parallel",),
            vmem_limit_bytes=32 * 1024 * 1024),
        cost_estimate=cost,
    )(sp, hp, *weights)
    return out[:B, :seg]


# --------------------------- pure-JAX reference --------------------------------
def reference_forward(params, stacked_state, stacked_hpolys):
    x = stacked_state.astype(jnp.float32)
    y = stacked_hpolys.astype(jnp.float32)
    B = x.shape[0]
    # state branch
    c1w = params["c1w"].T.reshape(8, STATE_C, K)
    s = jax.lax.conv_general_dilated(x, c1w, (1,), ((1, 1),),
                                     dimension_numbers=("NCH", "OIH", "NCH"))
    s = s + params["c1b"].reshape(1, 8, 1)
    s = jnp.maximum(s, 0.0)
    s = jax.lax.reduce_window(s, -jnp.inf, jax.lax.max, (1, 1, 2), (1, 1, 2), "VALID")
    s = s.reshape(B, 8)
    state_emb = s @ params["lsw"] + params["lsb"]
    # hpoly branch
    c2w = params["c2w"].T.reshape(16, HPOLY_C, K, K)
    h = jax.lax.conv_general_dilated(y, c2w, (1, 1), ((1, 1), (1, 1)),
                                     dimension_numbers=("NCHW", "OIHW", "NCHW"))
    h = h + params["c2b"].reshape(1, 16, 1, 1)
    h = jnp.maximum(h, 0.0)
    h = jax.lax.reduce_window(h, -jnp.inf, jax.lax.max, (1, 1, 2, 2), (1, 1, 2, 2), "VALID")
    h = jax.lax.reduce_window(h, -jnp.inf, jax.lax.max, (1, 1, 2, 2), (1, 1, 2, 2), "VALID")
    h = h.reshape(B, 16)
    hpoly_emb = h @ params["lhw"] + params["lhb"]
    # MLP
    comb = jnp.concatenate([state_emb, hpoly_emb], axis=1)
    w1 = jnp.concatenate([params["w1s"], params["w1h"]], axis=0)
    h1 = jnp.maximum(_layernorm(comb @ w1 + params["b1"], params["g1"], params["be1"]), 0.0)
    h2 = jnp.maximum(_layernorm(h1 @ params["w2"] + params["b2"], params["g2"], params["be2"]), 0.0)
    o = h2 @ params["w3"] + params["b3"]
    return _softplus_beta2(o)


# ----------------------------------- main ---------------------------------------
if __name__ == "__main__":
    B, SEG = 2, 8
    key = jax.random.PRNGKey(0)
    k1, k2 = jax.random.split(key)
    stacked_state = jax.random.normal(k1, (B, STATE_C, STATE_L), jnp.float32)
    stacked_hpolys = jax.random.normal(k2, (B, HPOLY_C, HPOLY_H, HPOLY_W), jnp.float32)

    params = init_params(SEG)
    kparams = prepare_kernel_params(params, SEG)

    tfs = conv_mlp_minsnap_forward(kparams, stacked_state, stacked_hpolys, SEG)
    tfs = jax.block_until_ready(tfs)
    assert tfs.shape == (B, SEG) and tfs.dtype == jnp.float32

    ref = jax.block_until_ready(reference_forward(params, stacked_state, stacked_hpolys))
    np.testing.assert_allclose(np.asarray(tfs), np.asarray(ref), rtol=2e-2, atol=2e-2)

    print("KERNEL_OK")
</pallas_src>

<mosaic_0001>
module attributes {stable_mosaic.version = 11 : i64} {
  func.func @fused_forward_kernel(%arg0: i32, %arg1: memref<8x18xf32, #tpu.memory_space<vmem>>, %arg2: memref<8x800xf32, #tpu.memory_space<vmem>>, %arg3: memref<18x16xbf16, #tpu.memory_space<vmem>>, %arg4: memref<800x256xbf16, #tpu.memory_space<vmem>>, %arg5: memref<32x128xbf16, #tpu.memory_space<vmem>>, %arg6: memref<128x128xbf16, #tpu.memory_space<vmem>>, %arg7: memref<128x128xbf16, #tpu.memory_space<vmem>>, %arg8: memref<16x256xf32, #tpu.memory_space<vmem>>, %arg9: memref<8x128xf32, #tpu.memory_space<vmem>>) attributes {dimension_semantics = [#tpu.dimension_semantics<parallel>], iteration_bounds = array<i64: 1>, scalar_prefetch = 0 : i64, scratch_operands = 0 : i64, tpu.core_type = #tpu.core_type<tc>, window_params = [{transform_indices = @transform_0, window_bounds = array<i64: 8, 18>}, {transform_indices = @transform_1, window_bounds = array<i64: 8, 800>}, {pipeline_mode = #tpu.pipeline_mode<synchronous>, transform_indices = @transform_2, window_bounds = array<i64: 18, 16>}, {pipeline_mode = #tpu.pipeline_mode<synchronous>, transform_indices = @transform_3, window_bounds = array<i64: 800, 256>}, {pipeline_mode = #tpu.pipeline_mode<synchronous>, transform_indices = @transform_4, window_bounds = array<i64: 32, 128>}, {pipeline_mode = #tpu.pipeline_mode<synchronous>, transform_indices = @transform_5, window_bounds = array<i64: 128, 128>}, {pipeline_mode = #tpu.pipeline_mode<synchronous>, transform_indices = @transform_6, window_bounds = array<i64: 128, 128>}, {pipeline_mode = #tpu.pipeline_mode<synchronous>, transform_indices = @transform_7, window_bounds = array<i64: 16, 256>}, {transform_indices = @transform_8, window_bounds = array<i64: 8, 128>}]} {
    %c0 = arith.constant 0 : index
    %c0_0 = arith.constant 0 : index
    %0 = vector.load %arg8[%c0, %c0_0] : memref<16x256xf32, #tpu.memory_space<vmem>>, vector<16x256xf32>
    %c0_1 = arith.constant 0 : index
    %c0_2 = arith.constant 0 : index
    %1 = vector.load %arg1[%c0_1, %c0_2] : memref<8x18xf32, #tpu.memory_space<vmem>>, vector<8x18xf32>
    %2 = arith.truncf %1 : vector<8x18xf32> to vector<8x18xbf16>
    %c0_3 = arith.constant 0 : index
    %c0_4 = arith.constant 0 : index
    %3 = vector.load %arg3[%c0_3, %c0_4] : memref<18x16xbf16, #tpu.memory_space<vmem>>, vector<18x16xbf16>
    %cst = arith.constant dense<0.000000e+00> : vector<8x16xf32>
    %4 = tpu.matmul %2, %3, %cst {dimension_numbers = #tpu.dot_dimension_numbers<[1], [0], [0], [1], [0, 0, 1, 1], [], []>} : vector<8x18xbf16>, vector<18x16xbf16>, vector<8x16xf32> -> vector<8x16xf32>
    %5 = vector.extract_strided_slice %0 {offsets = [0, 0], sizes = [1, 16], strides = [1, 1]} : vector<16x256xf32> to vector<1x16xf32>
    %6 = vector.broadcast %5 : vector<1x16xf32> to vector<8x16xf32>
    %7 = arith.addf %4, %6 : vector<8x16xf32>
    %cst_5 = arith.constant 0.000000e+00 : f32
    %8 = vector.broadcast %cst_5 : f32 to vector<8x16xf32>
    %9 = arith.maximumf %7, %8 : vector<8x16xf32>
    %10 = vector.extract_strided_slice %9 {offsets = [0, 0], sizes = [8, 8], strides = [1, 1]} : vector<8x16xf32> to vector<8x8xf32>
    %11 = vector.extract_strided_slice %9 {offsets = [0, 8], sizes = [8, 8], strides = [1, 1]} : vector<8x16xf32> to vector<8x8xf32>
    %12 = arith.maximumf %10, %11 : vector<8x8xf32>
    %c0_6 = arith.constant 0 : index
    %c0_7 = arith.constant 0 : index
    %13 = vector.load %arg2[%c0_6, %c0_7] : memref<8x800xf32, #tpu.memory_space<vmem>>, vector<8x800xf32>
    %14 = arith.truncf %13 : vector<8x800xf32> to vector<8x800xbf16>
    %c0_8 = arith.constant 0 : index
    %c0_9 = arith.constant 0 : index
    %15 = vector.load %arg4[%c0_8, %c0_9] : memref<800x256xbf16, #tpu.memory_space<vmem>>, vector<800x256xbf16>
    %cst_10 = arith.constant dense<0.000000e+00> : vector<8x256xf32>
    %16 = tpu.matmul %14, %15, %cst_10 {dimension_numbers = #tpu.dot_dimension_numbers<[1], [0], [0], [1], [0, 0, 1, 1], [], []>} : vector<8x800xbf16>, vector<800x256xbf16>, vector<8x256xf32> -> vector<8x256xf32>
    %17 = vector.extract_strided_slice %0 {offsets = [1, 0], sizes = [1, 256], strides = [1, 1]} : vector<16x256xf32> to vector<1x256xf32>
    %18 = vector.broadcast %17 : vector<1x256xf32> to vector<8x256xf32>
    %19 = arith.addf %16, %18 : vector<8x256xf32>
    %cst_11 = arith.constant 0.000000e+00 : f32
    %20 = vector.broadcast %cst_11 : f32 to vector<8x256xf32>
    %21 = arith.maximumf %19, %20 : vector<8x256xf32>
    %22 = vector.extract_strided_slice %21 {offsets = [0, 0], sizes = [8, 128], strides = [1, 1]} : vector<8x256xf32> to vector<8x128xf32>
    %23 = vector.extract_strided_slice %21 {offsets = [0, 128], sizes = [8, 128], strides = [1, 1]} : vector<8x256xf32> to vector<8x128xf32>
    %24 = arith.maximumf %22, %23 : vector<8x128xf32>
    %25 = vector.extract_strided_slice %24 {offsets = [0, 0], sizes = [8, 64], strides = [1, 1]} : vector<8x128xf32> to vector<8x64xf32>
    %26 = vector.extract_strided_slice %24 {offsets = [0, 64], sizes = [8, 64], strides = [1, 1]} : vector<8x128xf32> to vector<8x64xf32>
    %27 = arith.maximumf %25, %26 : vector<8x64xf32>
    %28 = vector.extract_strided_slice %27 {offsets = [0, 0], sizes = [8, 32], strides = [1, 1]} : vector<8x64xf32> to vector<8x32xf32>
    %29 = vector.extract_strided_slice %27 {offsets = [0, 32], sizes = [8, 32], strides = [1, 1]} : vector<8x64xf32> to vector<8x32xf32>
    %30 = arith.maximumf %28, %29 : vector<8x32xf32>
    %31 = vector.extract_strided_slice %30 {offsets = [0, 0], sizes = [8, 16], strides = [1, 1]} : vector<8x32xf32> to vector<8x16xf32>
    %32 = vector.extract_strided_slice %30 {offsets = [0, 16], sizes = [8, 16], strides = [1, 1]} : vector<8x32xf32> to vector<8x16xf32>
    %33 = arith.maximumf %31, %32 : vector<8x16xf32>
    %cst_12 = arith.constant 0.000000e+00 : f32
    %34 = vector.broadcast %cst_12 : f32 to vector<8x8xf32>
    %35 = tpu.concatenate %12, %33, %34 in 1 : vector<8x8xf32>, vector<8x16xf32>, vector<8x8xf32> -> vector<8x32xf32>
    %36 = arith.truncf %35 : vector<8x32xf32> to vector<8x32xbf16>
    %c0_13 = arith.constant 0 : index
    %c0_14 = arith.constant 0 : index
    %37 = vector.load %arg5[%c0_13, %c0_14] : memref<32x128xbf16, #tpu.memory_space<vmem>>, vector<32x128xbf16>
    %cst_15 = arith.constant dense<0.000000e+00> : vector<8x128xf32>
    %38 = tpu.matmul %36, %37, %cst_15 {dimension_numbers = #tpu.dot_dimension_numbers<[1], [0], [0], [1], [0, 0, 1, 1], [], []>} : vector<8x32xbf16>, vector<32x128xbf16>, vector<8x128xf32> -> vector<8x128xf32>
    %39 = vector.extract_strided_slice %0 {offsets = [2, 0], sizes = [1, 128], strides = [1, 1]} : vector<16x256xf32> to vector<1x128xf32>
    %40 = vector.broadcast %39 : vector<1x128xf32> to vector<8x128xf32>
    %41 = arith.addf %38, %40 : vector<8x128xf32>
    %42 = vector.extract_strided_slice %0 {offsets = [3, 0], sizes = [1, 128], strides = [1, 1]} : vector<16x256xf32> to vector<1x128xf32>
    %43 = vector.extract_strided_slice %0 {offsets = [4, 0], sizes = [1, 128], strides = [1, 1]} : vector<16x256xf32> to vector<1x128xf32>
    %cst_16 = arith.constant dense<0.000000e+00> : vector<8xf32>
    %44 = vector.multi_reduction <add>, %41, %cst_16 [1] : vector<8x128xf32> to vector<8xf32>
    %45 = vector.shape_cast %44 : vector<8xf32> to vector<8x1xf32>
    %cst_17 = arith.constant 1.280000e+02 : f32
    %46 = vector.broadcast %cst_17 : f32 to vector<8x1xf32>
    %47 = arith.divf %45, %46 : vector<8x1xf32>
    %48 = arith.mulf %41, %41 : vector<8x128xf32>
    %cst_18 = arith.constant dense<0.000000e+00> : vector<8xf32>
    %49 = vector.multi_reduction <add>, %48, %cst_18 [1] : vector<8x128xf32> to vector<8xf32>
    %50 = vector.shape_cast %49 : vector<8xf32> to vector<8x1xf32>
    %cst_19 = arith.constant 1.280000e+02 : f32
    %51 = vector.broadcast %cst_19 : f32 to vector<8x1xf32>
    %52 = arith.divf %50, %51 : vector<8x1xf32>
    %53 = arith.mulf %47, %47 : vector<8x1xf32>
    %54 = arith.subf %52, %53 : vector<8x1xf32>
    %cst_20 = arith.constant 0.000000e+00 : f32
    %55 = vector.broadcast %cst_20 : f32 to vector<8x1xf32>
    %56 = arith.maximumf %54, %55 : vector<8x1xf32>
    %57 = vector.broadcast %47 : vector<8x1xf32> to vector<8x128xf32>
    %58 = arith.subf %41, %57 : vector<8x128xf32>
    %cst_21 = arith.constant 9.99999974E-6 : f32
    %59 = vector.broadcast %cst_21 : f32 to vector<8x1xf32>
    %60 = arith.addf %56, %59 : vector<8x1xf32>
    %61 = math.rsqrt %60 : vector<8x1xf32>
    %62 = vector.broadcast %61 : vector<8x1xf32> to vector<8x128xf32>
    %63 = arith.mulf %58, %62 : vector<8x128xf32>
    %64 = vector.broadcast %42 : vector<1x128xf32> to vector<8x128xf32>
    %65 = arith.mulf %63, %64 : vector<8x128xf32>
    %66 = vector.broadcast %43 : vector<1x128xf32> to vector<8x128xf32>
    %67 = arith.addf %65, %66 : vector<8x128xf32>
    %cst_22 = arith.constant 0.000000e+00 : f32
    %68 = vector.broadcast %cst_22 : f32 to vector<8x128xf32>
    %69 = arith.maximumf %67, %68 : vector<8x128xf32>
    %70 = arith.truncf %69 : vector<8x128xf32> to vector<8x128xbf16>
    %c0_23 = arith.constant 0 : index
    %c0_24 = arith.constant 0 : index
    %71 = vector.load %arg6[%c0_23, %c0_24] : memref<128x128xbf16, #tpu.memory_space<vmem>>, vector<128x128xbf16>
    %cst_25 = arith.constant dense<0.000000e+00> : vector<8x128xf32>
    %72 = tpu.matmul %70, %71, %cst_25 {dimension_numbers = #tpu.dot_dimension_numbers<[1], [0], [0], [1], [0, 0, 1, 1], [], []>} : vector<8x128xbf16>, vector<128x128xbf16>, vector<8x128xf32> -> vector<8x128xf32>
    %73 = vector.extract_strided_slice %0 {offsets = [5, 0], sizes = [1, 128], strides = [1, 1]} : vector<16x256xf32> to vector<1x128xf32>
    %74 = vector.broadcast %73 : vector<1x128xf32> to vector<8x128xf32>
    %75 = arith.addf %72, %74 : vector<8x128xf32>
    %76 = vector.extract_strided_slice %0 {offsets = [6, 0], sizes = [1, 128], strides = [1, 1]} : vector<16x256xf32> to vector<1x128xf32>
    %77 = vector.extract_strided_slice %0 {offsets = [7, 0], sizes = [1, 128], strides = [1, 1]} : vector<16x256xf32> to vector<1x128xf32>
    %cst_26 = arith.constant dense<0.000000e+00> : vector<8xf32>
    %78 = vector.multi_reduction <add>, %75, %cst_26 [1] : vector<8x128xf32> to vector<8xf32>
    %79 = vector.shape_cast %78 : vector<8xf32> to vector<8x1xf32>
    %cst_27 = arith.constant 1.280000e+02 : f32
    %80 = vector.broadcast %cst_27 : f32 to vector<8x1xf32>
    %81 = arith.divf %79, %80 : vector<8x1xf32>
    %82 = arith.mulf %75, %75 : vector<8x128xf32>
    %cst_28 = arith.constant dense<0.000000e+00> : vector<8xf32>
    %83 = vector.multi_reduction <add>, %82, %cst_28 [1] : vector<8x128xf32> to vector<8xf32>
    %84 = vector.shape_cast %83 : vector<8xf32> to vector<8x1xf32>
    %cst_29 = arith.constant 1.280000e+02 : f32
    %85 = vector.broadcast %cst_29 : f32 to vector<8x1xf32>
    %86 = arith.divf %84, %85 : vector<8x1xf32>
    %87 = arith.mulf %81, %81 : vector<8x1xf32>
    %88 = arith.subf %86, %87 : vector<8x1xf32>
    %cst_30 = arith.constant 0.000000e+00 : f32
    %89 = vector.broadcast %cst_30 : f32 to vector<8x1xf32>
    %90 = arith.maximumf %88, %89 : vector<8x1xf32>
    %91 = vector.broadcast %81 : vector<8x1xf32> to vector<8x128xf32>
    %92 = arith.subf %75, %91 : vector<8x128xf32>
    %cst_31 = arith.constant 9.99999974E-6 : f32
    %93 = vector.broadcast %cst_31 : f32 to vector<8x1xf32>
    %94 = arith.addf %90, %93 : vector<8x1xf32>
    %95 = math.rsqrt %94 : vector<8x1xf32>
    %96 = vector.broadcast %95 : vector<8x1xf32> to vector<8x128xf32>
    %97 = arith.mulf %92, %96 : vector<8x128xf32>
    %98 = vector.broadcast %76 : vector<1x128xf32> to vector<8x128xf32>
    %99 = arith.mulf %97, %98 : vector<8x128xf32>
    %100 = vector.broadcast %77 : vector<1x128xf32> to vector<8x128xf32>
    %101 = arith.addf %99, %100 : vector<8x128xf32>
    %cst_32 = arith.constant 0.000000e+00 : f32
    %102 = vector.broadcast %cst_32 : f32 to vector<8x128xf32>
    %103 = arith.maximumf %101, %102 : vector<8x128xf32>
    %104 = arith.truncf %103 : vector<8x128xf32> to vector<8x128xbf16>
    %c0_33 = arith.constant 0 : index
    %c0_34 = arith.constant 0 : index
    %105 = vector.load %arg7[%c0_33, %c0_34] : memref<128x128xbf16, #tpu.memory_space<vmem>>, vector<128x128xbf16>
    %cst_35 = arith.constant dense<0.000000e+00> : vector<8x128xf32>
    %106 = tpu.matmul %104, %105, %cst_35 {dimension_numbers = #tpu.dot_dimension_numbers<[1], [0], [0], [1], [0, 0, 1, 1], [], []>} : vector<8x128xbf16>, vector<128x128xbf16>, vector<8x128xf32> -> vector<8x128xf32>
    %107 = vector.extract_strided_slice %0 {offsets = [8, 0], sizes = [1, 128], strides = [1, 1]} : vector<16x256xf32> to vector<1x128xf32>
    %108 = vector.broadcast %107 : vector<1x128xf32> to vector<8x128xf32>
    %109 = arith.addf %106, %108 : vector<8x128xf32>
    %cst_36 = arith.constant 0.000000e+00 : f32
    %110 = vector.broadcast %cst_36 : f32 to vector<8x128xf32>
    %111 = arith.maximumf %109, %110 : vector<8x128xf32>
    %cst_37 = arith.constant 2.000000e+00 : f32
    %112 = vector.broadcast %cst_37 : f32 to vector<8x128xf32>
    %113 = arith.mulf %112, %109 : vector<8x128xf32>
    %114 = math.absf %113 : vector<8x128xf32>
    %cst_38 = arith.constant 0.000000e+00 : f32
    %115 = vector.broadcast %cst_38 : f32 to vector<8x128xf32>
    %116 = arith.subf %115, %114 : vector<8x128xf32>
    %117 = math.exp %116 : vector<8x128xf32>
    %118 = math.log1p %117 : vector<8x128xf32>
    %cst_39 = arith.constant 5.000000e-01 : f32
    %119 = vector.broadcast %cst_39 : f32 to vector<8x128xf32>
    %120 = arith.mulf %119, %118 : vector<8x128xf32>
    %121 = arith.addf %111, %120 : vector<8x128xf32>
    %cst_40 = arith.constant 2.000000e+00 : f32
    %122 = vector.broadcast %cst_40 : f32 to vector<8x128xf32>
    %123 = arith.mulf %122, %109 : vector<8x128xf32>
    %cst_41 = arith.constant 2.000000e+01 : f32
    %124 = vector.broadcast %cst_41 : f32 to vector<8x128xf32>
    %125 = arith.cmpf ogt, %123, %124 : vector<8x128xf32>
    %126 = arith.select %125, %109, %121 : vector<8x128xi1>, vector<8x128xf32>
    %c0_42 = arith.constant 0 : index
    %c0_43 = arith.constant 0 : index
    %127 = vector.load %arg9[%c0_42, %c0_43] : memref<8x128xf32, #tpu.memory_space<vmem>>, vector<8x128xf32>
    tpu.vector_store %arg9[%c0_42, %c0_43], %126 {strides = array<i32>} : memref<8x128xf32, #tpu.memory_space<vmem>>, vector<8x128xf32>,
    return
  }
  func.func @transform_0(%arg0: i32) -> (i32, i32) {
    %c0_i32 = arith.constant 0 : i32
    %c0_i32_0 = arith.constant 0 : i32
    return %arg0, %c0_i32 : i32, i32
  }
  func.func @transform_1(%arg0: i32) -> (i32, i32) {
    %c0_i32 = arith.constant 0 : i32
    %c0_i32_0 = arith.constant 0 : i32
    return %arg0, %c0_i32 : i32, i32
  }
  func.func @transform_2(%arg0: i32) -> (i32, i32) {
    %c0_i32 = arith.constant 0 : i32
    %c0_i32_0 = arith.constant 0 : i32
    %c0_i32_1 = arith.constant 0 : i32
    return %c0_i32, %c0_i32_0 : i32, i32
  }
  func.func @transform_3(%arg0: i32) -> (i32, i32) {
    %c0_i32 = arith.constant 0 : i32
    %c0_i32_0 = arith.constant 0 : i32
    %c0_i32_1 = arith.constant 0 : i32
    return %c0_i32, %c0_i32_0 : i32, i32
  }
  func.func @transform_4(%arg0: i32) -> (i32, i32) {
    %c0_i32 = arith.constant 0 : i32
    %c0_i32_0 = arith.constant 0 : i32
    %c0_i32_1 = arith.constant 0 : i32
    return %c0_i32, %c0_i32_0 : i32, i32
  }
  func.func @transform_5(%arg0: i32) -> (i32, i32) {
    %c0_i32 = arith.constant 0 : i32
    %c0_i32_0 = arith.constant 0 : i32
    %c0_i32_1 = arith.constant 0 : i32
    return %c0_i32, %c0_i32_0 : i32, i32
  }
  func.func @transform_6(%arg0: i32) -> (i32, i32) {
    %c0_i32 = arith.constant 0 : i32
    %c0_i32_0 = arith.constant 0 : i32
    %c0_i32_1 = arith.constant 0 : i32
    return %c0_i32, %c0_i32_0 : i32, i32
  }
  func.func @transform_7(%arg0: i32) -> (i32, i32) {
    %c0_i32 = arith.constant 0 : i32
    %c0_i32_0 = arith.constant 0 : i32
    %c0_i32_1 = arith.constant 0 : i32
    return %c0_i32, %c0_i32_0 : i32, i32
  }
  func.func @transform_8(%arg0: i32) -> (i32, i32) {
    %c0_i32 = arith.constant 0 : i32
    %c0_i32_0 = arith.constant 0 : i32
    return %arg0, %c0_i32 : i32, i32
  }
}

</mosaic_0001>

<llo_original>
// kernel: tpu_custom_call.1
$region0: #{tpu_custom_call.1}
  #allocation0 [shape = 'u32[]', space=smem, size = 0x4, offset = 0x4, fixed_abs, tag = 'smem constant byte address 0x4 - core index']
  #allocation1 [shape = 'u32[144,128]{1,0:T(1,128)}', space=vmem, size = 0x12000, scoped, tag = 'internal scratch']
  %s0 = inlined_call_operand.hbm [shape: f32[8,18], index: 0, kind: input, shape index: {}]
  %s1 = inlined_call_operand.hbm [shape: f32[8,800], index: 1, kind: input, shape index: {}]
  %s2 = inlined_call_operand.vmem [shape: bf16[18,16], index: 2, kind: input, shape index: {}]
  %s3 = inlined_call_operand.hbm [shape: bf16[800,256], index: 3, kind: input, shape index: {}]
  %s4 = inlined_call_operand.hbm [shape: bf16[32,128], index: 4, kind: input, shape index: {}]
  %s5 = inlined_call_operand.hbm [shape: bf16[128,128], index: 5, kind: input, shape index: {}]
  %s6 = inlined_call_operand.hbm [shape: bf16[128,128], index: 6, kind: input, shape index: {}]
  %s7 = inlined_call_operand.vmem [shape: f32[16,256], index: 7, kind: input, shape index: {}]
  %s8 = inlined_call_operand.hbm [shape: f32[8,128], index: 8, kind: output, shape index: {}]
  %s9 = sld [smem:[#allocation0]]
  $region66: #{tpu_custom_call.1} parent=0
    _
  %s11 = ssub.s32 1, %s9
  %s12 = scalar_select 0, %s11, %s9
  $region1: #{tpu_custom_call.1} parent=0
    #allocation2 [shape = 'u8[4096]{0}', space=vmem, size = 0x1000, scoped, tag = 'input window, operand 0, single buffered']
    #allocation3 [shape = 's32[1]{0}', space=sflag, size = 0x4, scoped, tag = 'scoped memory for tpu_custom_call.1']
    #allocation4 [shape = 's32[1]{0}', space=sflag, size = 0x4, scoped, tag = 'scoped memory for tpu_custom_call.1']
    #allocation5 [shape = 'u8[28672]{0}', space=vmem, size = 0x7000, scoped, tag = 'input window, operand 1, single buffered']
    #allocation6 [shape = 's32[1]{0}', space=sflag, size = 0x4, scoped, tag = 'scoped memory for tpu_custom_call.1']
    #allocation7 [shape = 'u8[409600]{0}', space=vmem, size = 0x64000, scoped, tag = 'input window, operand 3, single buffered']
    #allocation8 [shape = 'u8[8192]{0}', space=vmem, size = 0x2000, scoped, tag = 'input window, operand 4, single buffered']
    #allocation9 [shape = 's32[1]{0}', space=sflag, size = 0x4, scoped, tag = 'scoped memory for tpu_custom_call.1']
    #allocation10 [shape = 'u8[32768]{0}', space=vmem, size = 0x8000, scoped, tag = 'input window, operand 5, single buffered']
    #allocation11 [shape = 'u8[32768]{0}', space=vmem, size = 0x8000, scoped, tag = 'input window, operand 6, single buffered']
    #allocation12 [shape = 's32[1]{0}', space=sflag, size = 0x4, scoped, tag = 'scoped memory for tpu_custom_call.1']
    #allocation13 [shape = 'u8[4096]{0}', space=vmem, size = 0x1000, scoped, tag = 'output window, operand 0, single buffered']
    %13 = vsyncpa [#allocation3], 0
    %14 = vsyncpa [#allocation6], 0
    %15 = vsyncpa [#allocation9], 0
    %16 = vsyncpa [#allocation12], 0
    %17 = vsyncpa [#allocation4], 0
    // Predicated region
    $region2: #{tpu_custom_call.1} parent=1 // pred_check
      _
    $region3: #{tpu_custom_call.1} parent=1 // pred_check_branch
      %19 = sbr.rel (0) target = $region5
    $region4: #{tpu_custom_call.1} parent=1 // pred_region
      %s21 = ssub.s32 128, 128
      %22 = vsyncadd [#allocation3], %s21
      %s24 = sshll.u32 [#allocation2], 4
      %s25 = int_to_ptr.vmem [resolvable:$true] %s24
      %27 = dma.hbm_to_vmem [thread:$0]  %s0, 128, %s25, [#allocation3]
    $region5: #{tpu_custom_call.1} parent=1 // pred_fallthru
      _
    // Predicated region
    $region6: #{tpu_custom_call.1} parent=1 // pred_check
      _
    $region7: #{tpu_custom_call.1} parent=1 // pred_check_branch
      %29 = sbr.rel (0) target = $region9
    $region8: #{tpu_custom_call.1} parent=1 // pred_region
      %s31 = ssub.s32 896, 896
      %32 = vsyncadd [#allocation6], %s31
      %s34 = sshll.u32 [#allocation5], 4
      %s35 = int_to_ptr.vmem [resolvable:$true] %s34
      %37 = dma.hbm_to_vmem [thread:$0]  %s1, 896, %s35, [#allocation6]
    $region9: #{tpu_custom_call.1} parent=1 // pred_fallthru
      _
    // Predicated region
    $region10: #{tpu_custom_call.1} parent=1 // pred_check
      _
    $region11: #{tpu_custom_call.1} parent=1 // pred_check_branch
      %39 = sbr.rel (0) target = $region13
    $region12: #{tpu_custom_call.1} parent=1 // pred_region
      _
    $region13: #{tpu_custom_call.1} parent=1 // pred_fallthru
      _
    // Predicated region
    $region14: #{tpu_custom_call.1} parent=1 // pred_check
      _
    $region15: #{tpu_custom_call.1} parent=1 // pred_check_branch
      %41 = sbr.rel (0) target = $region17
    $region16: #{tpu_custom_call.1} parent=1 // pred_region
      %s43 = ssub.s32 12800, 12800
      %44 = vsyncadd [#allocation6], %s43
      %s45 = sshll.u32 [#allocation7], 4
      %s46 = int_to_ptr.vmem [resolvable:$true] %s45
      %51 = dma.hbm_to_vmem [thread:$0]  %s3, 12800, %s46, [#allocation6], 128, 128, 8
    $region17: #{tpu_custom_call.1} parent=1 // pred_fallthru
      _
    // Predicated region
    $region18: #{tpu_custom_call.1} parent=1 // pred_check
      _
    $region19: #{tpu_custom_call.1} parent=1 // pred_check_branch
      %53 = sbr.rel (0) target = $region21
    $region20: #{tpu_custom_call.1} parent=1 // pred_region
      %s55 = ssub.s32 256, 256
      %56 = vsyncadd [#allocation9], %s55
      %s57 = sshll.u32 [#allocation8], 4
      %s58 = int_to_ptr.vmem [resolvable:$true] %s57
      %63 = dma.hbm_to_vmem [thread:$0]  %s4, 256, %s58, [#allocation9], 64, 64, 4
    $region21: #{tpu_custom_call.1} parent=1 // pred_fallthru
      _
    // Predicated region
    $region22: #{tpu_custom_call.1} parent=1 // pred_check
      _
    $region23: #{tpu_custom_call.1} parent=1 // pred_check_branch
      %65 = sbr.rel (0) target = $region25
    $region24: #{tpu_custom_call.1} parent=1 // pred_region
      %s67 = ssub.s32 1024, 1024
      %68 = vsyncadd [#allocation9], %s67
      %s69 = sshll.u32 [#allocation10], 4
      %s70 = int_to_ptr.vmem [resolvable:$true] %s69
      %75 = dma.hbm_to_vmem [thread:$0]  %s5, 1024, %s70, [#allocation9], 64, 64, 4
    $region25: #{tpu_custom_call.1} parent=1 // pred_fallthru
      _
    // Predicated region
    $region26: #{tpu_custom_call.1} parent=1 // pred_check
      _
    $region27: #{tpu_custom_call.1} parent=1 // pred_check_branch
      %77 = sbr.rel (0) target = $region29
    $region28: #{tpu_custom_call.1} parent=1 // pred_region
      %s79 = ssub.s32 1024, 1024
      %80 = vsyncadd [#allocation12], %s79
      %s81 = sshll.u32 [#allocation11], 4
      %s82 = int_to_ptr.vmem [resolvable:$true] %s81
      %87 = dma.hbm_to_vmem [thread:$0]  %s6, 1024, %s82, [#allocation12], 64, 64, 4
    $region29: #{tpu_custom_call.1} parent=1 // pred_fallthru
      _
    // Predicated region
    $region30: #{tpu_custom_call.1} parent=1 // pred_check
      _
    $region31: #{tpu_custom_call.1} parent=1 // pred_check_branch
      %89 = sbr.rel (0) target = $region33
    $region32: #{tpu_custom_call.1} parent=1 // pred_region
      _
    $region33: #{tpu_custom_call.1} parent=1 // pred_fallthru
      _
    // Predicated region
    $region34: #{tpu_custom_call.1} parent=1 // pred_check
      _
    $region35: #{tpu_custom_call.1} parent=1 // pred_check_branch
      %91 = sbr.rel (0) target = $region37
    $region36: #{tpu_custom_call.1} parent=1 // pred_region
      %92 = dma.done [#allocation3], 128
    $region37: #{tpu_custom_call.1} parent=1 // pred_fallthru
      _
    // Predicated region
    $region38: #{tpu_custom_call.1} parent=1 // pred_check
      _
    $region39: #{tpu_custom_call.1} parent=1 // pred_check_branch
      %94 = sbr.rel (0) target = $region41
    $region40: #{tpu_custom_call.1} parent=1 // pred_region
      %95 = dma.done [#allocation6], 896
    $region41: #{tpu_custom_call.1} parent=1 // pred_fallthru
      _
    // Predicated region
    $region42: #{tpu_custom_call.1} parent=1 // pred_check
      _
    $region43: #{tpu_custom_call.1} parent=1 // pred_check_branch
      %97 = sbr.rel (0) target = $region45
    $region44: #{tpu_custom_call.1} parent=1 // pred_region
      %98 = dma.done [#allocation6], 12800
    $region45: #{tpu_custom_call.1} parent=1 // pred_fallthru
      _
    // Predicated region
    $region46: #{tpu_custom_call.1} parent=1 // pred_check
      _
    $region47: #{tpu_custom_call.1} parent=1 // pred_check_branch
      %100 = sbr.rel (0) target = $region49
    $region48: #{tpu_custom_call.1} parent=1 // pred_region
      %101 = dma.done [#allocation9], 256
    $region49: #{tpu_custom_call.1} parent=1 // pred_fallthru
      _
    // Predicated region
    $region50: #{tpu_custom_call.1} parent=1 // pred_check
      _
    $region51: #{tpu_custom_call.1} parent=1 // pred_check_branch
      %103 = sbr.rel (0) target = $region53
    $region52: #{tpu_custom_call.1} parent=1 // pred_region
      %104 = dma.done [#allocation9], 1024
    $region53: #{tpu_custom_call.1} parent=1 // pred_fallthru
      _
    // Predicated region
    $region54: #{tpu_custom_call.1} parent=1 // pred_check
      _
    $region55: #{tpu_custom_call.1} parent=1 // pred_check_branch
      %106 = sbr.rel (0) target = $region57
    $region56: #{tpu_custom_call.1} parent=1 // pred_region
      %107 = dma.done [#allocation12], 1024
    $region57: #{tpu_custom_call.1} parent=1 // pred_fallthru
      _
    %v109 = vld [vmem:[%s7] sm:$0xff]
    %v110 = vld [vmem:[%s7 + $0x8] sm:$0xff]
    %v111 = vld [vmem:[%s7 + $0x10] sm:$0xff]
    %v112 = vld [vmem:[#allocation2] sm:$0xff]
    %v113 = vpack.c.bf16 %v112, %v112
    %v114 = vld [vmem:[%s2] sm:$0xf]
    %v115 = vld [vmem:[%s2 + $0x4] sm:$0xf]
    %v116 = vld [vmem:[%s2 + $0x8] sm:$0x1]
    %v117 = vlaneseq
    %v118 = vshrl.u32 %v117, 7
    %v119 = vsub.s32 0, %v118
    %v120 = vrot.slane %v109, %v119
    %v124 = vunpack.c.l.b16 %v114
    %v125 = vunpack.c.l.b16 %v115
    %v126 = vunpack.c.l.b16 %v116
    %v127 = vpack.c.b16 %v125, %v124
    %v128 = vpack.c.b16 %v126, %v126
    %vm130 = vcmask 146432
    %v132 = vsel %vm130, %v113, 0
    %vm134 = vcmask 1040384
    %v136 = vsel %vm134, %v128, 0
    %138 = vmatprep.subr.bf16.mxu0 0
    %139 = vmatpush1.bf16.msra.mxu0 0
    %140 = vmatprep.subr.bf16.mxu0 0
    %141 = vmatpush1.bf16.msra.mxu0 0
    %142 = vmatprep.subr.bf16.mxu0 0
    %143 = vmatpush1.bf16.msra.mxu0 0
    %144 = vmatprep.subr.bf16.mxu0 0
    %145 = vmatpush1.bf16.msra.mxu0 0
    %146 = vmatprep.subr.bf16.mxu0 0
    %147 = vmatpush1.bf16.msra.mxu0 0
    %148 = vmatprep.subr.bf16.mxu0 0
    %149 = vmatpush1.bf16.msra.mxu0 0
    %150 = vmatprep.subr.bf16.mxu0 0
    %151 = vmatpush1.bf16.msra.mxu0 %v136
    %152 = vmatprep.subr.bf16.mxu0 0
    %153 = vmatpush1.bf16.msra.mxu0 %v127
    %154 = vmatprep.subr.bf16.mxu0 0
    %155 = vmatpush2.bf16.msra.mxu0 0
    %156 = vmatprep.subr.bf16.mxu0 0
    %157 = vmatpush2.bf16.msra.mxu0 0
    %158 = vmatprep.subr.bf16.mxu0 0
    %159 = vmatpush2.bf16.msra.mxu0 0
    %160 = vmatprep.subr.bf16.mxu0 0
    %161 = vmatpush2.bf16.msra.mxu0 0
    %162 = vmatprep.subr.bf16.mxu0 0
    %163 = vmatpush2.bf16.msra.mxu0 0
    %164 = vmatprep.subr.bf16.mxu0 0
    %165 = vmatpush2.bf16.msra.mxu0 0
    %166 = vmatprep.subr.bf16.mxu0 0
    %167 = vmatpush2.bf16.msra.mxu0 0
    %168 = vmatprep.subr.bf16.mxu0 0
    %169 = vmatpush2.bf16.msra.mxu0 0
    %170 = vmatprep.mubr.bf16.mxu0 0
    %171 = vmatmul.mubr.bf16.gmra.mxu0 %v132
    %v172 = vpop.f32.mrf.mxu0
    %v173 = vadd.f32 %v120, %v172
    %v174 = vpop.f32.mrf.mxu0
    %v175 = vpop.f32.mrf.mxu0
    %v176 = vpop.f32.mrf.mxu0
    %177 = vdwg.mxu0
    %v178 = vmax.f32 %v173, 0.0
    %180 = vrot.lane.b32.xlu0 %v178, 120
    %v181 = vpop.permute.xlu0 %180
    %v183 = vmax.f32 %v178, %v181
    %v184 = vld [vmem:[#allocation5] sm:$0xff]
    %v185 = vld [vmem:[#allocation5 + $0x8] sm:$0xff]
    %v186 = vld [vmem:[#allocation5 + $0x10] sm:$0xff]
    %v187 = vld [vmem:[#allocation5 + $0x18] sm:$0xff]
    %v188 = vld [vmem:[#allocation5 + $0x20] sm:$0xff]
    %v189 = vld [vmem:[#allocation5 + $0x28] sm:$0xff]
    %v190 = vld [vmem:[#allocation5 + $0x30] sm:$0xff]
    %v191 = vpack.c.bf16 %v184, %v184
    %v192 = vpack.c.bf16 %v185, %v185
    %v193 = vpack.c.bf16 %v186, %v186
    %v194 = vpack.c.bf16 %v187, %v187
    %v195 = vpack.c.bf16 %v188, %v188
    %v196 = vpack.c.bf16 %v189, %v189
    %v197 = vpack.c.bf16 %v190, %v190
    %v198 = vld [vmem:[#allocation7] sm:$0xff]
    %v199 = vld [vmem:[#allocation7 + $0x8] sm:$0xff]
    %v200 = vld [vmem:[#allocation7 + $0x10] sm:$0xff]
    %v201 = vld [vmem:[#allocation7 + $0x18] sm:$0xff]
    %v202 = vld [vmem:[#allocation7 + $0x20] sm:$0xff]
    %v203 = vld [vmem:[#allocation7 + $0x28] sm:$0xff]
    %v204 = vld [vmem:[#allocation7 + $0x30] sm:$0xff]
    %v205 = vld [vmem:[#allocation7 + $0x38] sm:$0xff]
    %v206 = vld [vmem:[#allocation7 + $0x40] sm:$0xff]
    %v207 = vld [vmem:[#allocation7 + $0x48] sm:$0xff]
    %v208 = vld [vmem:[#allocation7 + $0x50] sm:$0xff]
    %v209 = vld [vmem:[#allocation7 + $0x58] sm:$0xff]
    %v210 = vld [vmem:[#allocation7 + $0x60] sm:$0xff]
    %v211 = vld [vmem:[#allocation7 + $0x68] sm:$0xff]
    %v212 = vld [vmem:[#allocation7 + $0x70] sm:$0xff]
    %v213 = vld [vmem:[#allocation7 + $0x78] sm:$0xff]
    %v214 = vld [vmem:[#allocation7 + $0x80] sm:$0xff]
    %v215 = vld [vmem:[#allocation7 + $0x88] sm:$0xff]
    %v216 = vld [vmem:[#allocation7 + $0x90] sm:$0xff]
    %v217 = vld [vmem:[#allocation7 + $0x98] sm:$0xff]
    %v218 = vld [vmem:[#allocation7 + $0xa0] sm:$0xff]
    %v219 = vld [vmem:[#allocation7 + $0xa8] sm:$0xff]
    %v220 = vld [vmem:[#allocation7 + $0xb0] sm:$0xff]
    %v221 = vld [vmem:[#allocation7 + $0xb8] sm:$0xff]
    %v222 = vld [vmem:[#allocation7 + $0xc0] sm:$0xff]
    %v223 = vld [vmem:[#allocation7 + $0xc8] sm:$0xff]
    %v224 = vld [vmem:[#allocation7 + $0xd0] sm:$0xff]
    %v225 = vld [vmem:[#allocation7 + $0xd8] sm:$0xff]
    %v226 = vld [vmem:[#allocation7 + $0xe0] sm:$0xff]
    %v227 = vld [vmem:[#allocation7 + $0xe8] sm:$0xff]
    %v228 = vld [vmem:[#allocation7 + $0xf0] sm:$0xff]
    %v229 = vld [vmem:[#allocation7 + $0xf8] sm:$0xff]
    %v230 = vld [vmem:[#allocation7 + $0x100] sm:$0xff]
    %v231 = vld [vmem:[#allocation7 + $0x108] sm:$0xff]
    %v232 = vld [vmem:[#allocation7 + $0x110] sm:$0xff]
    %v233 = vld [vmem:[#allocation7 + $0x118] sm:$0xff]
    %v234 = vld [vmem:[#allocation7 + $0x120] sm:$0xff]
    %v235 = vld [vmem:[#allocation7 + $0x128] sm:$0xff]
    %v236 = vld [vmem:[#allocation7 + $0x130] sm:$0xff]
    %v237 = vld [vmem:[#allocation7 + $0x138] sm:$0xff]
    %v238 = vld [vmem:[#allocation7 + $0x140] sm:$0xff]
    %v239 = vld [vmem:[#allocation7 + $0x148] sm:$0xff]
    %v240 = vld [vmem:[#allocation7 + $0x150] sm:$0xff]
    %v241 = vld [vmem:[#allocation7 + $0x158] sm:$0xff]
    %v242 = vld [vmem:[#allocation7 + $0x160] sm:$0xff]
    %v243 = vld [vmem:[#allocation7 + $0x168] sm:$0xff]
    %v244 = vld [vmem:[#allocation7 + $0x170] sm:$0xff]
    %v245 = vld [vmem:[#allocation7 + $0x178] sm:$0xff]
    %v246 = vld [vmem:[#allocation7 + $0x180] sm:$0xff]
    %v247 = vld [vmem:[#allocation7 + $0x188] sm:$0xff]
    %v248 = vld [vmem:[#allocation7 + $0x190] sm:$0xff]
    %v249 = vld [vmem:[#allocation7 + $0x198] sm:$0xff]
    %v250 = vld [vmem:[#allocation7 + $0x1a0] sm:$0xff]
    %v251 = vld [vmem:[#allocation7 + $0x1a8] sm:$0xff]
    %v252 = vld [vmem:[#allocation7 + $0x1b0] sm:$0xff]
    %v253 = vld [vmem:[#allocation7 + $0x1b8] sm:$0xff]
    %v254 = vld [vmem:[#allocation7 + $0x1c0] sm:$0xff]
    %v255 = vld [vmem:[#allocation7 + $0x1c8] sm:$0xff]
    %v256 = vld [vmem:[#allocation7 + $0x1d0] sm:$0xff]
    %v257 = vld [vmem:[#allocation7 + $0x1d8] sm:$0xff]
    %v258 = vld [vmem:[#allocation7 + $0x1e0] sm:$0xff]
    %v259 = vld [vmem:[#allocation7 + $0x1e8] sm:$0xff]
    %v260 = vld [vmem:[#allocation7 + $0x1f0] sm:$0xff]
    %v261 = vld [vmem:[#allocation7 + $0x1f8] sm:$0xff]
    %v262 = vld [vmem:[#allocation7 + $0x200] sm:$0xff]
    %v263 = vld [vmem:[#allocation7 + $0x208] sm:$0xff]
    %v264 = vld [vmem:[#allocation7 + $0x210] sm:$0xff]
    %v265 = vld [vmem:[#allocation7 + $0x218] sm:$0xff]
    %v266 = vld [vmem:[#allocation7 + $0x220] sm:$0xff]
    %v267 = vld [vmem:[#allocation7 + $0x228] sm:$0xff]
    %v268 = vld [vmem:[#allocation7 + $0x230] sm:$0xff]
    %v269 = vld [vmem:[#allocation7 + $0x238] sm:$0xff]
    %v270 = vld [vmem:[#allocation7 + $0x240] sm:$0xff]
    %v271 = vld [vmem:[#allocation7 + $0x248] sm:$0xff]
    %v272 = vld [vmem:[#allocation7 + $0x250] sm:$0xff]
    %v273 = vld [vmem:[#allocation7 + $0x258] sm:$0xff]
    %v274 = vld [vmem:[#allocation7 + $0x260] sm:$0xff]
    %v275 = vld [vmem:[#allocation7 + $0x268] sm:$0xff]
    %v276 = vld [vmem:[#allocation7 + $0x270] sm:$0xff]
    %v277 = vld [vmem:[#allocation7 + $0x278] sm:$0xff]
    %v278 = vld [vmem:[#allocation7 + $0x280] sm:$0xff]
    %v279 = vld [vmem:[#allocation7 + $0x288] sm:$0xff]
    %v280 = vld [vmem:[#allocation7 + $0x290] sm:$0xff]
    %v281 = vld [vmem:[#allocation7 + $0x298] sm:$0xff]
    %v282 = vld [vmem:[#allocation7 + $0x2a0] sm:$0xff]
    %v283 = vld [vmem:[#allocation7 + $0x2a8] sm:$0xff]
    %v284 = vld [vmem:[#allocation7 + $0x2b0] sm:$0xff]
    %v285 = vld [vmem:[#allocation7 + $0x2b8] sm:$0xff]
    %v286 = vld [vmem:[#allocation7 + $0x2c0] sm:$0xff]
    %v287 = vld [vmem:[#allocation7 + $0x2c8] sm:$0xff]
    %v288 = vld [vmem:[#allocation7 + $0x2d0] sm:$0xff]
    %v289 = vld [vmem:[#allocation7 + $0x2d8] sm:$0xff]
    %v290 = vld [vmem:[#allocation7 + $0x2e0] sm:$0xff]
    %v291 = vld [vmem:[#allocation7 + $0x2e8] sm:$0xff]
    %v292 = vld [vmem:[#allocation7 + $0x2f0] sm:$0xff]
    %v293 = vld [vmem:[#allocation7 + $0x2f8] sm:$0xff]
    %v294 = vld [vmem:[#allocation7 + $0x300] sm:$0xff]
    %v295 = vld [vmem:[#allocation7 + $0x308] sm:$0xff]
    %v296 = vld [vmem:[#allocation7 + $0x310] sm:$0xff]
    %v297 = vld [vmem:[#allocation7 + $0x318] sm:$0xff]
    %v298 = vlaneseq
    %v299 = vshrl.u32 %v298, 7
    %v300 = vsub.s32 1, %v299
    %v301 = vrot.slane %v109, %v300
    %v302 = vlaneseq
    %v303 = vshrl.u32 %v302, 7
    %v304 = vsub.s32 1, %v303
    %v305 = vrot.slane %v110, %v304
    %v406 = vunpack.c.l.b16 %v198
    %v407 = vunpack.c.h.b16 %v198
    %v408 = vunpack.c.l.b16 %v199
    %v409 = vunpack.c.h.b16 %v199
    %v410 = vunpack.c.l.b16 %v200
    %v411 = vunpack.c.h.b16 %v200
    %v412 = vunpack.c.l.b16 %v201
    %v413 = vunpack.c.h.b16 %v201
    %v414 = vunpack.c.l.b16 %v202
    %v415 = vunpack.c.h.b16 %v202
    %v416 = vunpack.c.l.b16 %v203
    %v417 = vunpack.c.h.b16 %v203
    %v418 = vunpack.c.l.b16 %v204
    %v419 = vunpack.c.h.b16 %v204
    %v420 = vunpack.c.l.b16 %v205
    %v421 = vunpack.c.h.b16 %v205
    %v422 = vunpack.c.l.b16 %v206
    %v423 = vunpack.c.h.b16 %v206
    %v424 = vunpack.c.l.b16 %v207
    %v425 = vunpack.c.h.b16 %v207
    %v426 = vunpack.c.l.b16 %v208
    %v427 = vunpack.c.h.b16 %v208
    %v428 = vunpack.c.l.b16 %v209
    %v429 = vunpack.c.h.b16 %v209
    %v430 = vunpack.c.l.b16 %v210
    %v431 = vunpack.c.h.b16 %v210
    %v432 = vunpack.c.l.b16 %v211
    %v433 = vunpack.c.h.b16 %v211
    %v434 = vunpack.c.l.b16 %v212
    %v435 = vunpack.c.h.b16 %v212
    %v436 = vunpack.c.l.b16 %v213
    %v437 = vunpack.c.h.b16 %v213
    %v438 = vunpack.c.l.b16 %v214
    %v439 = vunpack.c.h.b16 %v214
    %v440 = vunpack.c.l.b16 %v215
    %v441 = vunpack.c.h.b16 %v215
    %v442 = vunpack.c.l.b16 %v216
    %v443 = vunpack.c.h.b16 %v216
    %v444 = vunpack.c.l.b16 %v217
    %v445 = vunpack.c.h.b16 %v217
    %v446 = vunpack.c.l.b16 %v218
    %v447 = vunpack.c.h.b16 %v218
    %v448 = vunpack.c.l.b16 %v219
    %v449 = vunpack.c.h.b16 %v219
    %v450 = vunpack.c.l.b16 %v220
    %v451 = vunpack.c.h.b16 %v220
    %v452 = vunpack.c.l.b16 %v221
    %v453 = vunpack.c.h.b16 %v221
    %v454 = vunpack.c.l.b16 %v222
    %v455 = vunpack.c.h.b16 %v222
    %v456 = vunpack.c.l.b16 %v223
    %v457 = vunpack.c.h.b16 %v223
    %v458 = vunpack.c.l.b16 %v224
    %v459 = vunpack.c.h.b16 %v224
    %v460 = vunpack.c.l.b16 %v225
    %v461 = vunpack.c.h.b16 %v225
    %v462 = vunpack.c.l.b16 %v226
    %v463 = vunpack.c.h.b16 %v226
    %v464 = vunpack.c.l.b16 %v227
    %v465 = vunpack.c.h.b16 %v227
    %v466 = vunpack.c.l.b16 %v228
    %v467 = vunpack.c.h.b16 %v228
    %v468 = vunpack.c.l.b16 %v229
    %v469 = vunpack.c.h.b16 %v229
    %v470 = vunpack.c.l.b16 %v230
    %v471 = vunpack.c.h.b16 %v230
    %v472 = vunpack.c.l.b16 %v231
    %v473 = vunpack.c.h.b16 %v231
    %v474 = vunpack.c.l.b16 %v232
    %v475 = vunpack.c.h.b16 %v232
    %v476 = vunpack.c.l.b16 %v233
    %v477 = vunpack.c.h.b16 %v233
    %v478 = vunpack.c.l.b16 %v234
    %v479 = vunpack.c.h.b16 %v234
    %v480 = vunpack.c.l.b16 %v235
    %v481 = vunpack.c.h.b16 %v235
    %v482 = vunpack.c.l.b16 %v236
    %v483 = vunpack.c.h.b16 %v236
    %v484 = vunpack.c.l.b16 %v237
    %v485 = vunpack.c.h.b16 %v237
    %v486 = vunpack.c.l.b16 %v238
    %v487 = vunpack.c.h.b16 %v238
    %v488 = vunpack.c.l.b16 %v239
    %v489 = vunpack.c.h.b16 %v239
    %v490 = vunpack.c.l.b16 %v240
    %v491 = vunpack.c.h.b16 %v240
    %v492 = vunpack.c.l.b16 %v241
    %v493 = vunpack.c.h.b16 %v241
    %v494 = vunpack.c.l.b16 %v242
    %v495 = vunpack.c.h.b16 %v242
    %v496 = vunpack.c.l.b16 %v243
    %v497 = vunpack.c.h.b16 %v243
    %v498 = vunpack.c.l.b16 %v244
    %v499 = vunpack.c.h.b16 %v244
    %v500 = vunpack.c.l.b16 %v245
    %v501 = vunpack.c.h.b16 %v245
    %v502 = vunpack.c.l.b16 %v246
    %v503 = vunpack.c.h.b16 %v246
    %v504 = vunpack.c.l.b16 %v247
    %v505 = vunpack.c.h.b16 %v247
    %v506 = vunpack.c.l.b16 %v248
    %v507 = vunpack.c.h.b16 %v248
    %v508 = vunpack.c.l.b16 %v249
    %v509 = vunpack.c.h.b16 %v249
    %v510 = vunpack.c.l.b16 %v250
    %v511 = vunpack.c.h.b16 %v250
    %v512 = vunpack.c.l.b16 %v251
    %v513 = vunpack.c.h.b16 %v251
    %v514 = vunpack.c.l.b16 %v252
    %v515 = vunpack.c.h.b16 %v252
    %v516 = vunpack.c.l.b16 %v253
    %v517 = vunpack.c.h.b16 %v253
    %v518 = vunpack.c.l.b16 %v254
    %v519 = vunpack.c.h.b16 %v254
    %v520 = vunpack.c.l.b16 %v255
    %v521 = vunpack.c.h.b16 %v255
    %v522 = vunpack.c.l.b16 %v256
    %v523 = vunpack.c.h.b16 %v256
    %v524 = vunpack.c.l.b16 %v257
    %v525 = vunpack.c.h.b16 %v257
    %v526 = vunpack.c.l.b16 %v258
    %v527 = vunpack.c.h.b16 %v258
    %v528 = vunpack.c.l.b16 %v259
    %v529 = vunpack.c.h.b16 %v259
    %v530 = vunpack.c.l.b16 %v260
    %v531 = vunpack.c.h.b16 %v260
    %v532 = vunpack.c.l.b16 %v261
    %v533 = vunpack.c.h.b16 %v261
    %v534 = vunpack.c.l.b16 %v262
    %v535 = vunpack.c.h.b16 %v262
    %v536 = vunpack.c.l.b16 %v263
    %v537 = vunpack.c.h.b16 %v263
    %v538 = vunpack.c.l.b16 %v264
    %v539 = vunpack.c.h.b16 %v264
    %v540 = vunpack.c.l.b16 %v265
    %v541 = vunpack.c.h.b16 %v265
    %v542 = vunpack.c.l.b16 %v266
    %v543 = vunpack.c.h.b16 %v266
    %v544 = vunpack.c.l.b16 %v267
    %v545 = vunpack.c.h.b16 %v267
    %v546 = vunpack.c.l.b16 %v268
    %v547 = vunpack.c.h.b16 %v268
    %v548 = vunpack.c.l.b16 %v269
    %v549 = vunpack.c.h.b16 %v269
    %v550 = vunpack.c.l.b16 %v270
    %v551 = vunpack.c.h.b16 %v270
    %v552 = vunpack.c.l.b16 %v271
    %v553 = vunpack.c.h.b16 %v271
    %v554 = vunpack.c.l.b16 %v272
    %v555 = vunpack.c.h.b16 %v272
    %v556 = vunpack.c.l.b16 %v273
    %v557 = vunpack.c.h.b16 %v273
    %v558 = vunpack.c.l.b16 %v274
    %v559 = vunpack.c.h.b16 %v274
    %v560 = vunpack.c.l.b16 %v275
    %v561 = vunpack.c.h.b16 %v275
    %v562 = vunpack.c.l.b16 %v276
    %v563 = vunpack.c.h.b16 %v276
    %v564 = vunpack.c.l.b16 %v277
    %v565 = vunpack.c.h.b16 %v277
    %v566 = vunpack.c.l.b16 %v278
    %v567 = vunpack.c.h.b16 %v278
    %v568 = vunpack.c.l.b16 %v279
    %v569 = vunpack.c.h.b16 %v279
    %v570 = vunpack.c.l.b16 %v280
    %v571 = vunpack.c.h.b16 %v280
    %v572 = vunpack.c.l.b16 %v281
    %v573 = vunpack.c.h.b16 %v281
    %v574 = vunpack.c.l.b16 %v282
    %v575 = vunpack.c.h.b16 %v282
    %v576 = vunpack.c.l.b16 %v283
    %v577 = vunpack.c.h.b16 %v283
    %v578 = vunpack.c.l.b16 %v284
    %v579 = vunpack.c.h.b16 %v284
    %v580 = vunpack.c.l.b16 %v285
    %v581 = vunpack.c.h.b16 %v285
    %v582 = vunpack.c.l.b16 %v286
    %v583 = vunpack.c.h.b16 %v286
    %v584 = vunpack.c.l.b16 %v287
    %v585 = vunpack.c.h.b16 %v287
    %v586 = vunpack.c.l.b16 %v288
    %v587 = vunpack.c.h.b16 %v288
    %v588 = vunpack.c.l.b16 %v289
    %v589 = vunpack.c.h.b16 %v289
    %v590 = vunpack.c.l.b16 %v290
    %v591 = vunpack.c.h.b16 %v290
    %v592 = vunpack.c.l.b16 %v291
    %v593 = vunpack.c.h.b16 %v291
    %v594 = vunpack.c.l.b16 %v292
    %v595 = vunpack.c.h.b16 %v292
    %v596 = vunpack.c.l.b16 %v293
    %v597 = vunpack.c.h.b16 %v293
    %v598 = vunpack.c.l.b16 %v294
    %v599 = vunpack.c.h.b16 %v294
    %v600 = vunpack.c.l.b16 %v295
    %v601 = vunpack.c.h.b16 %v295
    %v602 = vunpack.c.l.b16 %v296
    %v603 = vunpack.c.h.b16 %v296
    %v604 = vunpack.c.l.b16 %v297
    %v605 = vunpack.c.h.b16 %v297
    %v606 = vpack.c.b16 %v408, %v406
    %v607 = vpack.c.b16 %v409, %v407
    %v608 = vpack.c.b16 %v412, %v410
    %v609 = vpack.c.b16 %v413, %v411
    %v610 = vpack.c.b16 %v416, %v414
    %v611 = vpack.c.b16 %v417, %v415
    %v612 = vpack.c.b16 %v420, %v418
    %v613 = vpack.c.b16 %v421, %v419
    %v614 = vpack.c.b16 %v424, %v422
    %v615 = vpack.c.b16 %v425, %v423
    %v616 = vpack.c.b16 %v428, %v426
    %v617 = vpack.c.b16 %v429, %v427
    %v618 = vpack.c.b16 %v432, %v430
    %v619 = vpack.c.b16 %v433, %v431
    %v620 = vpack.c.b16 %v436, %v434
    %v621 = vpack.c.b16 %v437, %v435
    %v622 = vpack.c.b16 %v440, %v438
    %v623 = vpack.c.b16 %v441, %v439
    %v624 = vpack.c.b16 %v444, %v442
    %v625 = vpack.c.b16 %v445, %v443
    %v626 = vpack.c.b16 %v448, %v446
    %v627 = vpack.c.b16 %v449, %v447
    %v628 = vpack.c.b16 %v452, %v450
    %v629 = vpack.c.b16 %v453, %v451
    %v630 = vpack.c.b16 %v456, %v454
    %v631 = vpack.c.b16 %v457, %v455
    %v632 = vpack.c.b16 %v460, %v458
    %v633 = vpack.c.b16 %v461, %v459
    %v634 = vpack.c.b16 %v464, %v462
    %v635 = vpack.c.b16 %v465, %v463
    %v636 = vpack.c.b16 %v468, %v466
    %v637 = vpack.c.b16 %v469, %v467
    %v638 = vpack.c.b16 %v472, %v470
    %v639 = vpack.c.b16 %v473, %v471
    %v640 = vpack.c.b16 %v476, %v474
    %v641 = vpack.c.b16 %v477, %v475
    %v642 = vpack.c.b16 %v480, %v478
    %v643 = vpack.c.b16 %v481, %v479
    %v644 = vpack.c.b16 %v484, %v482
    %v645 = vpack.c.b16 %v485, %v483
    %v646 = vpack.c.b16 %v488, %v486
    %v647 = vpack.c.b16 %v489, %v487
    %v648 = vpack.c.b16 %v492, %v490
    %v649 = vpack.c.b16 %v493, %v491
    %v650 = vpack.c.b16 %v496, %v494
    %v651 = vpack.c.b16 %v497, %v495
    %v652 = vpack.c.b16 %v500, %v498
    %v653 = vpack.c.b16 %v501, %v499
    %v654 = vpack.c.b16 %v504, %v502
    %v655 = vpack.c.b16 %v505, %v503
    %v656 = vpack.c.b16 %v508, %v506
    %v657 = vpack.c.b16 %v509, %v507
    %v658 = vpack.c.b16 %v512, %v510
    %v659 = vpack.c.b16 %v513, %v511
    %v660 = vpack.c.b16 %v516, %v514
    %v661 = vpack.c.b16 %v517, %v515
    %v662 = vpack.c.b16 %v520, %v518
    %v663 = vpack.c.b16 %v521, %v519
    %v664 = vpack.c.b16 %v524, %v522
    %v665 = vpack.c.b16 %v525, %v523
    %v666 = vpack.c.b16 %v528, %v526
    %v667 = vpack.c.b16 %v529, %v527
    %v668 = vpack.c.b16 %v532, %v530
    %v669 = vpack.c.b16 %v533, %v531
    %v670 = vpack.c.b16 %v536, %v534
    %v671 = vpack.c.b16 %v537, %v535
    %v672 = vpack.c.b16 %v540, %v538
    %v673 = vpack.c.b16 %v541, %v539
    %v674 = vpack.c.b16 %v544, %v542
    %v675 = vpack.c.b16 %v545, %v543
    %v676 = vpack.c.b16 %v548, %v546
    %v677 = vpack.c.b16 %v549, %v547
    %v678 = vpack.c.b16 %v552, %v550
    %v679 = vpack.c.b16 %v553, %v551
    %v680 = vpack.c.b16 %v556, %v554
    %v681 = vpack.c.b16 %v557, %v555
    %v682 = vpack.c.b16 %v560, %v558
    %v683 = vpack.c.b16 %v561, %v559
    %v684 = vpack.c.b16 %v564, %v562
    %v685 = vpack.c.b16 %v565, %v563
    %v686 = vpack.c.b16 %v568, %v566
    %v687 = vpack.c.b16 %v569, %v567
    %v688 = vpack.c.b16 %v572, %v570
    %v689 = vpack.c.b16 %v573, %v571
    %v690 = vpack.c.b16 %v576, %v574
    %v691 = vpack.c.b16 %v577, %v575
    %v692 = vpack.c.b16 %v580, %v578
    %v693 = vpack.c.b16 %v581, %v579
    %v694 = vpack.c.b16 %v584, %v582
    %v695 = vpack.c.b16 %v585, %v583
    %v696 = vpack.c.b16 %v588, %v586
    %v697 = vpack.c.b16 %v589, %v587
    %v698 = vpack.c.b16 %v592, %v590
    %v699 = vpack.c.b16 %v593, %v591
    %v700 = vpack.c.b16 %v596, %v594
    %v701 = vpack.c.b16 %v597, %v595
    %v702 = vpack.c.b16 %v600, %v598
    %v703 = vpack.c.b16 %v601, %v599
    %v704 = vpack.c.b16 %v604, %v602
    %v705 = vpack.c.b16 %v605, %v603
    %vm806 = vcmask 261120
    %v808 = vsel %vm806, %v197, 0
    %810 = vmatprep.subr.bf16.mxu0 %v621
    %811 = vmatpush1.bf16.msra.mxu0 %v620
    %812 = vmatprep.subr.bf16.mxu0 %v619
    %813 = vmatpush1.bf16.msra.mxu0 %v618
    %814 = vmatprep.subr.bf16.mxu0 %v617
    %815 = vmatpush1.bf16.msra.mxu0 %v616
    %816 = vmatprep.subr.bf16.mxu0 %v615
    %817 = vmatpush1.bf16.msra.mxu0 %v614
    %818 = vmatprep.subr.bf16.mxu0 %v613
    %819 = vmatpush1.bf16.msra.mxu0 %v612
    %820 = vmatprep.subr.bf16.mxu0 %v611
    %821 = vmatpush1.bf16.msra.mxu0 %v610
    %822 = vmatprep.subr.bf16.mxu0 %v609
    %823 = vmatpush1.bf16.msra.mxu0 %v608
    %824 = vmatprep.subr.bf16.mxu0 %v607
    %825 = vmatpush1.bf16.msra.mxu0 %v606
    %826 = vmatprep.subr.bf16.mxu0 %v637
    %827 = vmatpush2.bf16.msra.mxu0 %v636
    %828 = vmatprep.subr.bf16.mxu0 %v635
    %829 = vmatpush2.bf16.msra.mxu0 %v634
    %830 = vmatprep.subr.bf16.mxu0 %v633
    %831 = vmatpush2.bf16.msra.mxu0 %v632
    %832 = vmatprep.subr.bf16.mxu0 %v631
    %833 = vmatpush2.bf16.msra.mxu0 %v630
    %834 = vmatprep.subr.bf16.mxu0 %v629
    %835 = vmatpush2.bf16.msra.mxu0 %v628
    %836 = vmatprep.subr.bf16.mxu0 %v627
    %837 = vmatpush2.bf16.msra.mxu0 %v626
    %838 = vmatprep.subr.bf16.mxu0 %v625
    %839 = vmatpush2.bf16.msra.mxu0 %v624
    %840 = vmatprep.subr.bf16.mxu0 %v623
    %841 = vmatpush2.bf16.msra.mxu0 %v622
    %842 = vmatprep.mubr.bf16.mxu0 %v192
    %843 = vmatmul.mubr.bf16.gmra.mxu0 %v191
    %v844 = vpop.f32.mrf.mxu0
    %v845 = vadd.f32 %v301, %v844
    %v846 = vpop.f32.mrf.mxu0
    %v847 = vadd.f32 %v305, %v846
    %v848 = vpop.f32.mrf.mxu0
    %v849 = vpop.f32.mrf.mxu0
    %850 = vdwg.mxu0
    %851 = vmatprep.subr.bf16.mxu0 %v653
    %852 = vmatpush1.bf16.msra.mxu0 %v652
    %853 = vmatprep.subr.bf16.mxu0 %v651
    %854 = vmatpush1.bf16.msra.mxu0 %v650
    %855 = vmatprep.subr.bf16.mxu0 %v649
    %856 = vmatpush1.bf16.msra.mxu0 %v648
    %857 = vmatprep.subr.bf16.mxu0 %v647
    %858 = vmatpush1.bf16.msra.mxu0 %v646
    %859 = vmatprep.subr.bf16.mxu0 %v645
    %860 = vmatpush1.bf16.msra.mxu0 %v644
    %861 = vmatprep.subr.bf16.mxu0 %v643
    %862 = vmatpush1.bf16.msra.mxu0 %v642
    %863 = vmatprep.subr.bf16.mxu0 %v641
    %864 = vmatpush1.bf16.msra.mxu0 %v640
    %865 = vmatprep.subr.bf16.mxu0 %v639
    %866 = vmatpush1.bf16.msra.mxu0 %v638
    %867 = vmatprep.subr.bf16.mxu0 %v669
    %868 = vmatpush2.bf16.msra.mxu0 %v668
    %869 = vmatprep.subr.bf16.mxu0 %v667
    %870 = vmatpush2.bf16.msra.mxu0 %v666
    %871 = vmatprep.subr.bf16.mxu0 %v665
    %872 = vmatpush2.bf16.msra.mxu0 %v664
    %873 = vmatprep.subr.bf16.mxu0 %v663
    %874 = vmatpush2.bf16.msra.mxu0 %v662
    %875 = vmatprep.subr.bf16.mxu0 %v661
    %876 = vmatpush2.bf16.msra.mxu0 %v660
    %877 = vmatprep.subr.bf16.mxu0 %v659
    %878 = vmatpush2.bf16.msra.mxu0 %v658
    %879 = vmatprep.subr.bf16.mxu0 %v657
    %880 = vmatpush2.bf16.msra.mxu0 %v656
    %881 = vmatprep.subr.bf16.mxu0 %v655
    %882 = vmatpush2.bf16.msra.mxu0 %v654
    %883 = vmatprep.mubr.bf16.mxu0 %v194
    %884 = vmatmul.mubr.bf16.gmra.mxu0 %v193
    %v885 = vpop.f32.mrf.mxu0
    %v886 = vadd.f32 %v845, %v885
    %v887 = vpop.f32.mrf.mxu0
    %v888 = vadd.f32 %v847, %v887
    %v889 = vpop.f32.mrf.mxu0
    %v890 = vpop.f32.mrf.mxu0
    %891 = vdwg.mxu0
    %892 = vmatprep.subr.bf16.mxu0 %v685
    %893 = vmatpush1.bf16.msra.mxu0 %v684
    %894 = vmatprep.subr.bf16.mxu0 %v683
    %895 = vmatpush1.bf16.msra.mxu0 %v682
    %896 = vmatprep.subr.bf16.mxu0 %v681
    %897 = vmatpush1.bf16.msra.mxu0 %v680
    %898 = vmatprep.subr.bf16.mxu0 %v679
    %899 = vmatpush1.bf16.msra.mxu0 %v678
    %900 = vmatprep.subr.bf16.mxu0 %v677
    %901 = vmatpush1.bf16.msra.mxu0 %v676
    %902 = vmatprep.subr.bf16.mxu0 %v675
    %903 = vmatpush1.bf16.msra.mxu0 %v674
    %904 = vmatprep.subr.bf16.mxu0 %v673
    %905 = vmatpush1.bf16.msra.mxu0 %v672
    %906 = vmatprep.subr.bf16.mxu0 %v671
    %907 = vmatpush1.bf16.msra.mxu0 %v670
    %908 = vmatprep.subr.bf16.mxu0 %v701
    %909 = vmatpush2.bf16.msra.mxu0 %v700
    %910 = vmatprep.subr.bf16.mxu0 %v699
    %911 = vmatpush2.bf16.msra.mxu0 %v698
    %912 = vmatprep.subr.bf16.mxu0 %v697
    %913 = vmatpush2.bf16.msra.mxu0 %v696
    %914 = vmatprep.subr.bf16.mxu0 %v695
    %915 = vmatpush2.bf16.msra.mxu0 %v694
    %916 = vmatprep.subr.bf16.mxu0 %v693
    %917 = vmatpush2.bf16.msra.mxu0 %v692
    %918 = vmatprep.subr.bf16.mxu0 %v691
    %919 = vmatpush2.bf16.msra.mxu0 %v690
    %920 = vmatprep.subr.bf16.mxu0 %v689
    %921 = vmatpush2.bf16.msra.mxu0 %v688
    %922 = vmatprep.subr.bf16.mxu0 %v687
    %923 = vmatpush2.bf16.msra.mxu0 %v686
    %924 = vmatprep.mubr.bf16.mxu0 %v196
    %925 = vmatmul.mubr.bf16.gmra.mxu0 %v195
    %v926 = vpop.f32.mrf.mxu0
    %v927 = vadd.f32 %v886, %v926
    %v928 = vpop.f32.mrf.mxu0
    %v929 = vadd.f32 %v888, %v928
    %v930 = vpop.f32.mrf.mxu0
    %v931 = vpop.f32.mrf.mxu0
    %932 = vdwg.mxu0
    %933 = vmatprep.subr.bf16.mxu0 0
    %934 = vmatpush1.bf16.msra.mxu0 0
    %935 = vmatprep.subr.bf16.mxu0 0
    %936 = vmatpush1.bf16.msra.mxu0 0
    %937 = vmatprep.subr.bf16.mxu0 0
    %938 = vmatpush1.bf16.msra.mxu0 0
    %939 = vmatprep.subr.bf16.mxu0 0
    %940 = vmatpush1.bf16.msra.mxu0 0
    %941 = vmatprep.subr.bf16.mxu0 0
    %942 = vmatpush1.bf16.msra.mxu0 0
    %943 = vmatprep.subr.bf16.mxu0 0
    %944 = vmatpush1.bf16.msra.mxu0 0
    %945 = vmatprep.subr.bf16.mxu0 %v705
    %946 = vmatpush1.bf16.msra.mxu0 %v704
    %947 = vmatprep.subr.bf16.mxu0 %v703
    %948 = vmatpush1.bf16.msra.mxu0 %v702
    %949 = vmatprep.subr.bf16.mxu0 0
    %950 = vmatpush2.bf16.msra.mxu0 0
    %951 = vmatprep.subr.bf16.mxu0 0
    %952 = vmatpush2.bf16.msra.mxu0 0
    %953 = vmatprep.subr.bf16.mxu0 0
    %954 = vmatpush2.bf16.msra.mxu0 0
    %955 = vmatprep.subr.bf16.mxu0 0
    %956 = vmatpush2.bf16.msra.mxu0 0
    %957 = vmatprep.subr.bf16.mxu0 0
    %958 = vmatpush2.bf16.msra.mxu0 0
    %959 = vmatprep.subr.bf16.mxu0 0
    %960 = vmatpush2.bf16.msra.mxu0 0
    %961 = vmatprep.subr.bf16.mxu0 0
    %962 = vmatpush2.bf16.msra.mxu0 0
    %963 = vmatprep.subr.bf16.mxu0 0
    %964 = vmatpush2.bf16.msra.mxu0 0
    %965 = vmatprep.mubr.bf16.mxu0 0
    %966 = vmatmul.mubr.bf16.gmra.mxu0 %v808
    %v967 = vpop.f32.mrf.mxu0
    %v968 = vadd.f32 %v927, %v967
    %v969 = vpop.f32.mrf.mxu0
    %v970 = vadd.f32 %v929, %v969
    %v971 = vpop.f32.mrf.mxu0
    %v972 = vpop.f32.mrf.mxu0
    %973 = vdwg.mxu0
    %v974 = vmax.f32 %v968, 0.0
    %v975 = vmax.f32 %v970, 0.0
    %v976 = vmax.f32 %v974, %v975
    %978 = vrot.lane.b32.xlu0 %v976, 64
    %v979 = vpop.permute.xlu0 %978
    %v981 = vmax.f32 %v976, %v979
    %983 = vrot.lane.b32.xlu0 %v981, 96
    %v984 = vpop.permute.xlu0 %983
    %v986 = vmax.f32 %v981, %v984
    %988 = vrot.lane.b32.xlu0 %v986, 112
    %v989 = vpop.permute.xlu0 %988
    %v991 = vmax.f32 %v986, %v989
    %993 = vrot.lane.b32.xlu0 %v991, 8
    %v994 = vpop.permute.xlu0 %993
    %vm996 = vcmask 64512
    %v997 = vsel %vm996, %v183, %v994
    %vm998 = vcmask 195584
    %v999 = vsel %vm998, %v997, 0.0
    %v1000 = vpack.c.bf16 %v999, %v999
    %v1001 = vld [vmem:[#allocation8] sm:$0xf]
    %v1002 = vld [vmem:[#allocation8 + $0x4] sm:$0xf]
    %v1003 = vld [vmem:[#allocation8 + $0x8] sm:$0xf]
    %v1004 = vld [vmem:[#allocation8 + $0xc] sm:$0xf]
    %v1005 = vlaneseq
    %v1006 = vshrl.u32 %v1005, 7
    %v1007 = vsub.s32 2, %v1006
    %v1008 = vrot.slane %v109, %v1007
    %v1013 = vunpack.c.l.b16 %v1001
    %v1014 = vunpack.c.l.b16 %v1002
    %v1015 = vunpack.c.l.b16 %v1003
    %v1016 = vunpack.c.l.b16 %v1004
    %v1017 = vpack.c.b16 %v1014, %v1013
    %v1018 = vpack.c.b16 %v1016, %v1015
    %v1022 = vsel %vm806, %v1000, 0
    %1024 = vmatprep.subr.bf16.mxu0 0
    %1025 = vmatpush1.bf16.msra.mxu0 0
    %1026 = vmatprep.subr.bf16.mxu0 0
    %1027 = vmatpush1.bf16.msra.mxu0 0
    %1028 = vmatprep.subr.bf16.mxu0 0
    %1029 = vmatpush1.bf16.msra.mxu0 0
    %1030 = vmatprep.subr.bf16.mxu0 0
    %1031 = vmatpush1.bf16.msra.mxu0 0
    %1032 = vmatprep.subr.bf16.mxu0 0
    %1033 = vmatpush1.bf16.msra.mxu0 0
    %1034 = vmatprep.subr.bf16.mxu0 0
    %1035 = vmatpush1.bf16.msra.mxu0 0
    %1036 = vmatprep.subr.bf16.mxu0 0
    %1037 = vmatpush1.bf16.msra.mxu0 %v1018
    %1038 = vmatprep.subr.bf16.mxu0 0
    %1039 = vmatpush1.bf16.msra.mxu0 %v1017
    %1040 = vmatprep.subr.bf16.mxu0 0
    %1041 = vmatpush2.bf16.msra.mxu0 0
    %1042 = vmatprep.subr.bf16.mxu0 0
    %1043 = vmatpush2.bf16.msra.mxu0 0
    %1044 = vmatprep.subr.bf16.mxu0 0
    %1045 = vmatpush2.bf16.msra.mxu0 0
    %1046 = vmatprep.subr.bf16.mxu0 0
    %1047 = vmatpush2.bf16.msra.mxu0 0
    %1048 = vmatprep.subr.bf16.mxu0 0
    %1049 = vmatpush2.bf16.msra.mxu0 0
    %1050 = vmatprep.subr.bf16.mxu0 0
    %1051 = vmatpush2.bf16.msra.mxu0 0
    %1052 = vmatprep.subr.bf16.mxu0 0
    %1053 = vmatpush2.bf16.msra.mxu0 0
    %1054 = vmatprep.subr.bf16.mxu0 0
    %1055 = vmatpush2.bf16.msra.mxu0 0
    %1056 = vmatprep.mubr.bf16.mxu0 0
    %1057 = vmatmul.mubr.bf16.gmra.mxu0 %v1022
    %v1058 = vpop.f32.mrf.mxu0
    %v1059 = vadd.f32 %v1008, %v1058
    %v1060 = vpop.f32.mrf.mxu0
    %v1061 = vpop.f32.mrf.mxu0
    %v1062 = vpop.f32.mrf.mxu0
    %1063 = vdwg.mxu0
    %1064 = vadd.xlane.f32.xlu0 %v1059
    %v1065 = vpop.xlane.xlu0 %1064
    %v1066 = vrcp.pop 128.0
    %v1067 = vmul.f32 %v1065, %v1066
    %v1068 = vmul.f32 %v1059, %v1059
    %1069 = vadd.xlane.f32.xlu0 %v1068
    %v1070 = vpop.xlane.xlu0 %1069
    %v1071 = vmul.f32 %v1070, %v1066
    %v1072 = vmul.f32 %v1067, %v1067
    %v1073 = vsub.f32 %v1071, %v1072
    %v1074 = vmax.f32 %v1073, 0.0
    %v1075 = vsub.f32 %v1059, %v1067
    %v1076 = vadd.f32 %v1074, 1e-05
    %v1077 = vrsqrt.pop %v1076
    %v1078 = vmul.f32 %v1075, %v1077
    %v1079 = vlaneseq
    %v1080 = vshrl.u32 %v1079, 7
    %v1081 = vsub.s32 3, %v1080
    %v1082 = vrot.slane %v109, %v1081
    %v1083 = vmul.f32 %v1078, %v1082
    %v1084 = vlaneseq
    %v1085 = vshrl.u32 %v1084, 7
    %v1086 = vsub.s32 4, %v1085
    %v1087 = vrot.slane %v109, %v1086
    %v1088 = vadd.f32 %v1083, %v1087
    %v1089 = vmax.f32 %v1088, 0.0
    %v1090 = vpack.c.bf16 %v1089, %v1089
    %v1091 = vld [vmem:[#allocation10] sm:$0xf]
    %v1092 = vld [vmem:[#allocation10 + $0x4] sm:$0xf]
    %v1093 = vld [vmem:[#allocation10 + $0x8] sm:$0xf]
    %v1094 = vld [vmem:[#allocation10 + $0xc] sm:$0xf]
    %v1095 = vld [vmem:[#allocation10 + $0x10] sm:$0xf]
    %v1096 = vld [vmem:[#allocation10 + $0x14] sm:$0xf]
    %v1097 = vld [vmem:[#allocation10 + $0x18] sm:$0xf]
    %v1098 = vld [vmem:[#allocation10 + $0x1c] sm:$0xf]
    %v1099 = vld [vmem:[#allocation10 + $0x20] sm:$0xf]
    %v1100 = vld [vmem:[#allocation10 + $0x24] sm:$0xf]
    %v1101 = vld [vmem:[#allocation10 + $0x28] sm:$0xf]
    %v1102 = vld [vmem:[#allocation10 + $0x2c] sm:$0xf]
    %v1103 = vld [vmem:[#allocation10 + $0x30] sm:$0xf]
    %v1104 = vld [vmem:[#allocation10 + $0x34] sm:$0xf]
    %v1105 = vld [vmem:[#allocation10 + $0x38] sm:$0xf]
    %v1106 = vld [vmem:[#allocation10 + $0x3c] sm:$0xf]
    %v1107 = vlaneseq
    %v1108 = vshrl.u32 %v1107, 7
    %v1109 = vsub.s32 5, %v1108
    %v1110 = vrot.slane %v109, %v1109
    %v1127 = vunpack.c.l.b16 %v1091
    %v1128 = vunpack.c.l.b16 %v1092
    %v1129 = vunpack.c.l.b16 %v1093
    %v1130 = vunpack.c.l.b16 %v1094
    %v1131 = vunpack.c.l.b16 %v1095
    %v1132 = vunpack.c.l.b16 %v1096
    %v1133 = vunpack.c.l.b16 %v1097
    %v1134 = vunpack.c.l.b16 %v1098
    %v1135 = vunpack.c.l.b16 %v1099
    %v1136 = vunpack.c.l.b16 %v1100
    %v1137 = vunpack.c.l.b16 %v1101
    %v1138 = vunpack.c.l.b16 %v1102
    %v1139 = vunpack.c.l.b16 %v1103
    %v1140 = vunpack.c.l.b16 %v1104
    %v1141 = vunpack.c.l.b16 %v1105
    %v1142 = vunpack.c.l.b16 %v1106
    %v1143 = vpack.c.b16 %v1128, %v1127
    %v1144 = vpack.c.b16 %v1130, %v1129
    %v1145 = vpack.c.b16 %v1132, %v1131
    %v1146 = vpack.c.b16 %v1134, %v1133
    %v1147 = vpack.c.b16 %v1136, %v1135
    %v1148 = vpack.c.b16 %v1138, %v1137
    %v1149 = vpack.c.b16 %v1140, %v1139
    %v1150 = vpack.c.b16 %v1142, %v1141
    %1159 = vmatprep.subr.bf16.mxu0 0
    %1160 = vmatpush1.bf16.msra.mxu0 %v1150
    %1161 = vmatprep.subr.bf16.mxu0 0
    %1162 = vmatpush1.bf16.msra.mxu0 %v1149
    %1163 = vmatprep.subr.bf16.mxu0 0
    %1164 = vmatpush1.bf16.msra.mxu0 %v1148
    %1165 = vmatprep.subr.bf16.mxu0 0
    %1166 = vmatpush1.bf16.msra.mxu0 %v1147
    %1167 = vmatprep.subr.bf16.mxu0 0
    %1168 = vmatpush1.bf16.msra.mxu0 %v1146
    %1169 = vmatprep.subr.bf16.mxu0 0
    %1170 = vmatpush1.bf16.msra.mxu0 %v1145
    %1171 = vmatprep.subr.bf16.mxu0 0
    %1172 = vmatpush1.bf16.msra.mxu0 %v1144
    %1173 = vmatprep.subr.bf16.mxu0 0
    %1174 = vmatpush1.bf16.msra.mxu0 %v1143
    %1175 = vmatprep.subr.bf16.mxu0 0
    %1176 = vmatpush2.bf16.msra.mxu0 0
    %1177 = vmatprep.subr.bf16.mxu0 0
    %1178 = vmatpush2.bf16.msra.mxu0 0
    %1179 = vmatprep.subr.bf16.mxu0 0
    %1180 = vmatpush2.bf16.msra.mxu0 0
    %1181 = vmatprep.subr.bf16.mxu0 0
    %1182 = vmatpush2.bf16.msra.mxu0 0
    %1183 = vmatprep.subr.bf16.mxu0 0
    %1184 = vmatpush2.bf16.msra.mxu0 0
    %1185 = vmatprep.subr.bf16.mxu0 0
    %1186 = vmatpush2.bf16.msra.mxu0 0
    %1187 = vmatprep.subr.bf16.mxu0 0
    %1188 = vmatpush2.bf16.msra.mxu0 0
    %1189 = vmatprep.subr.bf16.mxu0 0
    %1190 = vmatpush2.bf16.msra.mxu0 0
    %1191 = vmatprep.mubr.bf16.mxu0 0
    %1192 = vmatmul.mubr.bf16.gmra.mxu0 %v1090
    %v1193 = vpop.f32.mrf.mxu0
    %v1194 = vadd.f32 %v1110, %v1193
    %v1195 = vpop.f32.mrf.mxu0
    %v1196 = vpop.f32.mrf.mxu0
    %v1197 = vpop.f32.mrf.mxu0
    %1198 = vdwg.mxu0
    %1199 = vadd.xlane.f32.xlu0 %v1194
    %v1200 = vpop.xlane.xlu0 %1199
    %v1201 = vmul.f32 %v1200, %v1066
    %v1202 = vmul.f32 %v1194, %v1194
    %1203 = vadd.xlane.f32.xlu0 %v1202
    %v1204 = vpop.xlane.xlu0 %1203
    %v1205 = vmul.f32 %v1204, %v1066
    %v1206 = vmul.f32 %v1201, %v1201
    %v1207 = vsub.f32 %v1205, %v1206
    %v1208 = vmax.f32 %v1207, 0.0
    %v1209 = vsub.f32 %v1194, %v1201
    %v1210 = vadd.f32 %v1208, 1e-05
    %v1211 = vrsqrt.pop %v1210
    %v1212 = vmul.f32 %v1209, %v1211
    %v1213 = vlaneseq
    %v1214 = vshrl.u32 %v1213, 7
    %v1215 = vsub.s32 6, %v1214
    %v1216 = vrot.slane %v109, %v1215
    %v1217 = vmul.f32 %v1212, %v1216
    %v1218 = vlaneseq
    %v1219 = vshrl.u32 %v1218, 7
    %v1220 = vsub.s32 7, %v1219
    %v1221 = vrot.slane %v109, %v1220
    %v1222 = vadd.f32 %v1217, %v1221
    %v1223 = vmax.f32 %v1222, 0.0
    %v1224 = vpack.c.bf16 %v1223, %v1223
    %v1225 = vld [vmem:[#allocation11] sm:$0xf]
    %v1226 = vld [vmem:[#allocation11 + $0x4] sm:$0xf]
    %v1227 = vld [vmem:[#allocation11 + $0x8] sm:$0xf]
    %v1228 = vld [vmem:[#allocation11 + $0xc] sm:$0xf]
    %v1229 = vld [vmem:[#allocation11 + $0x10] sm:$0xf]
    %v1230 = vld [vmem:[#allocation11 + $0x14] sm:$0xf]
    %v1231 = vld [vmem:[#allocation11 + $0x18] sm:$0xf]
    %v1232 = vld [vmem:[#allocation11 + $0x1c] sm:$0xf]
    %v1233 = vld [vmem:[#allocation11 + $0x20] sm:$0xf]
    %v1234 = vld [vmem:[#allocation11 + $0x24] sm:$0xf]
    %v1235 = vld [vmem:[#allocation11 + $0x28] sm:$0xf]
    %v1236 = vld [vmem:[#allocation11 + $0x2c] sm:$0xf]
    %v1237 = vld [vmem:[#allocation11 + $0x30] sm:$0xf]
    %v1238 = vld [vmem:[#allocation11 + $0x34] sm:$0xf]
    %v1239 = vld [vmem:[#allocation11 + $0x38] sm:$0xf]
    %v1240 = vld [vmem:[#allocation11 + $0x3c] sm:$0xf]
    %v1241 = vlaneseq
    %v1242 = vshrl.u32 %v1241, 7
    %v1243 = vsub.s32 0, %v1242
    %v1244 = vrot.slane %v111, %v1243
    %v1261 = vunpack.c.l.b16 %v1225
    %v1262 = vunpack.c.l.b16 %v1226
    %v1263 = vunpack.c.l.b16 %v1227
    %v1264 = vunpack.c.l.b16 %v1228
    %v1265 = vunpack.c.l.b16 %v1229
    %v1266 = vunpack.c.l.b16 %v1230
    %v1267 = vunpack.c.l.b16 %v1231
    %v1268 = vunpack.c.l.b16 %v1232
    %v1269 = vunpack.c.l.b16 %v1233
    %v1270 = vunpack.c.l.b16 %v1234
    %v1271 = vunpack.c.l.b16 %v1235
    %v1272 = vunpack.c.l.b16 %v1236
    %v1273 = vunpack.c.l.b16 %v1237
    %v1274 = vunpack.c.l.b16 %v1238
    %v1275 = vunpack.c.l.b16 %v1239
    %v1276 = vunpack.c.l.b16 %v1240
    %v1277 = vpack.c.b16 %v1262, %v1261
    %v1278 = vpack.c.b16 %v1264, %v1263
    %v1279 = vpack.c.b16 %v1266, %v1265
    %v1280 = vpack.c.b16 %v1268, %v1267
    %v1281 = vpack.c.b16 %v1270, %v1269
    %v1282 = vpack.c.b16 %v1272, %v1271
    %v1283 = vpack.c.b16 %v1274, %v1273
    %v1284 = vpack.c.b16 %v1276, %v1275
    %1293 = vmatprep.subr.bf16.mxu0 0
    %1294 = vmatpush1.bf16.msra.mxu0 %v1284
    %1295 = vmatprep.subr.bf16.mxu0 0
    %1296 = vmatpush1.bf16.msra.mxu0 %v1283
    %1297 = vmatprep.subr.bf16.mxu0 0
    %1298 = vmatpush1.bf16.msra.mxu0 %v1282
    %1299 = vmatprep.subr.bf16.mxu0 0
    %1300 = vmatpush1.bf16.msra.mxu0 %v1281
    %1301 = vmatprep.subr.bf16.mxu0 0
    %1302 = vmatpush1.bf16.msra.mxu0 %v1280
    %1303 = vmatprep.subr.bf16.mxu0 0
    %1304 = vmatpush1.bf16.msra.mxu0 %v1279
    %1305 = vmatprep.subr.bf16.mxu0 0
    %1306 = vmatpush1.bf16.msra.mxu0 %v1278
    %1307 = vmatprep.subr.bf16.mxu0 0
    %1308 = vmatpush1.bf16.msra.mxu0 %v1277
    %1309 = vmatprep.subr.bf16.mxu0 0
    %1310 = vmatpush2.bf16.msra.mxu0 0
    %1311 = vmatprep.subr.bf16.mxu0 0
    %1312 = vmatpush2.bf16.msra.mxu0 0
    %1313 = vmatprep.subr.bf16.mxu0 0
    %1314 = vmatpush2.bf16.msra.mxu0 0
    %1315 = vmatprep.subr.bf16.mxu0 0
    %1316 = vmatpush2.bf16.msra.mxu0 0
    %1317 = vmatprep.subr.bf16.mxu0 0
    %1318 = vmatpush2.bf16.msra.mxu0 0
    %1319 = vmatprep.subr.bf16.mxu0 0
    %1320 = vmatpush2.bf16.msra.mxu0 0
    %1321 = vmatprep.subr.bf16.mxu0 0
    %1322 = vmatpush2.bf16.msra.mxu0 0
    %1323 = vmatprep.subr.bf16.mxu0 0
    %1324 = vmatpush2.bf16.msra.mxu0 0
    %1325 = vmatprep.mubr.bf16.mxu0 0
    %1326 = vmatmul.mubr.bf16.gmra.mxu0 %v1224
    %v1327 = vpop.f32.mrf.mxu0
    %v1328 = vadd.f32 %v1244, %v1327
    %v1329 = vpop.f32.mrf.mxu0
    %v1330 = vpop.f32.mrf.mxu0
    %v1331 = vpop.f32.mrf.mxu0
    %1332 = vdwg.mxu0
    %v1333 = vmax.f32 %v1328, 0.0
    %v1334 = vmul.f32 %v1328, 2.0
    %v1335 = vand.u32 2147483647, %v1334
    %v1336 = vsub.f32 0.0, %v1335
    %v1337 = vmul.f32 %v1336, 1.442695
    %v1338 = vpow.pop %v1337
    %v1339 = vadd.f32 %v1338, 1.0
    %v1340 = vlog2.pop %v1339
    %v1341 = vmul.f32 %v1340, 0.6931472
    %v1342 = vmul.f32 -0.5, %v1338
    %v1343 = vadd.f32 %v1342, 1.0
    %v1344 = vmul.f32 %v1343, %v1338
    %v1345 = vand.u32 2147483647, %v1338
    %vm1346 = vcmp.lt.f32.partialorder %v1345, 0.0004427343
    %v1347 = vsel %vm1346, %v1344, %v1341
    %v1348 = vmul.f32 %v1347, 0.5
    %v1349 = vadd.f32 %v1333, %v1348
    %vm1350 = vcmp.gt.f32.partialorder %v1334, 20.0
    %v1351 = vsel %vm1350, %v1328, %v1349
    %1352 = vst [vmem:[#allocation13] sm:$0xff] %v1351
    // Predicated region
    $region58: #{tpu_custom_call.1} parent=1 // pred_check
      _
    $region59: #{tpu_custom_call.1} parent=1 // pred_check_branch
      %1354 = sbr.rel (0) target = $region61
    $region60: #{tpu_custom_call.1} parent=1 // pred_region
      %s1356 = ssub.s32 128, 128
      %1357 = vsyncadd [#allocation4], %s1356
      %s1359 = sshll.u32 [#allocation13], 4
      %s1360 = int_to_ptr.vmem [resolvable:$true] %s1359
      %1362 = dma.vmem_to_hbm [thread:$0]  %s1360, 128, %s8, [#allocation4]
    $region61: #{tpu_custom_call.1} parent=1 // pred_fallthru
      _
    // Predicated region
    $region62: #{tpu_custom_call.1} parent=1 // pred_check
      _
    $region63: #{tpu_custom_call.1} parent=1 // pred_check_branch
      %1364 = sbr.rel (0) target = $region65
    $region64: #{tpu_custom_call.1} parent=1 // pred_region
      %1365 = dma.done [#allocation4], 128
    $region65: #{tpu_custom_call.1} parent=1 // pred_fallthru
      _
    %1366 = vsyncpa [#allocation3], 1
    %1367 = vsyncpa [#allocation6], 1
    %1368 = vsyncpa [#allocation9], 1
    %1369 = vsyncpa [#allocation12], 1
    %1370 = vsyncpa [#allocation4], 1

</llo_original>
